<compile_context>
chip_gen: v7x
topology: tpu7x:2x2x1
jax: 0.10.0
libtpu: 0.0.40
codegen_flags: <defaults>
</compile_context>

<pallas_src>
import jax
import jax.numpy as jnp
from jax import lax
from jax.experimental import pallas as pl
from jax.experimental.pallas import tpu as pltpu

# Small, shape-consistent hyper-params (real config: hidden=768, head=12).
HIDDEN      = 128                  # config.hidden_size
NUM_HEADS   = 4                    # config.head
HEAD_DIM    = HIDDEN // NUM_HEADS
NUM_CLASSES = 8                    # config.num_classes
SCALE       = 1.0 / (HEAD_DIM ** 0.5)

B = 8   # BERT batch size        -> attention sequence length L
S = 4   # concatenated seq len   -> attention batch N


def fused_mha_classifier_kernel(x_ref, qkvb_ref, pc_ref, out_ref):
    # x_ref   : (NL, E + NL)  -> [:, :E] tokens (n-major rows n*L + l),
    #                             [:, E:] block-diagonal additive mask (0 / -1e30)
    # qkvb_ref: (E+1, 3E)     -> rows 0..E-1 packed [Wq.T | Wk.T | Wv.T], row E bias
    # pc_ref  : (E+1, E+C)    -> [:E, :E]=Wo.T, [E, :E]=bo, [:E, E:]=Wc.T, [E, E:]=bc
    # out_ref : (N, C)
    NL = x_ref.shape[0]
    E = x_ref.shape[1] - NL
    N, C = out_ref.shape
    L = NL // N
    H = NUM_HEADS
    Dh = E // H

    x = x_ref[:, 0:E]                                    # (NL, E)
    mask = x_ref[:, E:E + NL]                            # (NL, NL)

    # Fused QKV projection: one lane-dense (NL,E)@(E,3E) MXU matmul (+ bias row).
    qkv = jnp.dot(x, qkvb_ref[0:E, :],
                  preferred_element_type=jnp.float32) + qkvb_ref[E:E + 1, :]
    q = qkv[:, 0:E] * SCALE            # scale after bias (matches nn.MultiheadAttention)
    k = qkv[:, E:2 * E]
    v = qkv[:, 2 * E:3 * E]

    attn = jnp.zeros((NL, E), jnp.float32)

    # Per-head attention over the full (NL, NL) tile with a block-diagonal mask
    # (a token attends only to tokens of its own attention batch n). H is tiny,
    # so the Python loop fully unrolls into 3 small matmuls per head.
    for h in range(H):
        lo = h * Dh
        qh = q[:, lo:lo + Dh]                            # (NL, Dh)
        kh = k[:, lo:lo + Dh]
        vh = v[:, lo:lo + Dh]
        # scores: contract Dh (minor dim of both operands) -> no K transpose.
        s = lax.dot_general(qh, kh, (((1,), (1,)), ((), ())),
                            preferred_element_type=jnp.float32) + mask     # (NL, NL)
        s = s - jnp.max(s, axis=-1, keepdims=True)
        p = jnp.exp(s)
        # exact denominator (keeps the tight correctness check); at production
        # scale use pl.reciprocal(denom, approx=True) to move this to the EUP.
        p = p / jnp.sum(p, axis=-1, keepdims=True)
        ctx = jnp.dot(p, vh, preferred_element_type=jnp.float32)           # (NL, Dh)
        # fold the head-sum into the output projection: accumulate ctx_h @ Wo_h.
        attn = attn + jnp.dot(ctx, pc_ref[lo:lo + Dh, 0:E],
                              preferred_element_type=jnp.float32)          # (NL, E)
    attn = attn + pc_ref[E:E + 1, 0:E]                                     # + bo

    # mean over the attention sequence axis (L = BERT batch) == mean(dim=0),
    # then classifier; single store of all S rows.
    pooled = jnp.mean(attn.reshape(N, L, E), axis=1)                       # (N, E)
    logits = jnp.dot(pooled, pc_ref[0:E, E:E + C],
                     preferred_element_type=jnp.float32) + pc_ref[E:E + 1, E:E + C]
    out_ref[...] = logits.astype(out_ref.dtype)                            # (N, C)


def _pack_params(params):
    """Pack PyTorch-layout params into two lane-dense slabs (host-side, frozen)."""
    wq, wk, wv, bq, bk, bv, wo, bo, wc, bc = params
    E, C = HIDDEN, NUM_CLASSES
    # slab 1: fused QKV weight (E, 3E) with bias as the last row -> (E+1, 3E)
    wqkv = jnp.concatenate([wq.T, wk.T, wv.T], axis=1)
    bqkv = jnp.concatenate([bq, bk, bv]).reshape(1, 3 * E)
    qkvb = jnp.concatenate([wqkv, bqkv], axis=0)
    # slab 2: [Wo.T | Wc.T] stacked with [bo | bc] as the last row -> (E+1, E+C)
    left = jnp.concatenate([wo.T, bo.reshape(1, E)], axis=0)
    right = jnp.concatenate([wc.T, bc.reshape(1, C)], axis=0)
    projcls = jnp.concatenate([left, right], axis=1)
    return qkvb, projcls


def _pack_x(hidden_states):
    """(B,S,E) -> n-major token rows + precomputed block-diagonal mask (host-side)."""
    Bb, Ss, E = hidden_states.shape
    L, N = Bb, Ss
    NL = N * L
    # (L, N, E) -> (N, L, E) -> (NL, E): row index = n*L + l (free layout plumbing).
    x = jnp.transpose(hidden_states, (1, 0, 2)).reshape(NL, E)
    blk = jnp.arange(NL) // L
    mask = jnp.where(blk[:, None] == blk[None, :], 0.0, -1e30).astype(jnp.float32)
    return jnp.concatenate([x, mask], axis=1)                     # (NL, E + NL)


def bert_att_forward(hidden_states, params):
    """hidden_states: (B, S, E) concatenated BERT last_hidden_states.
    Dropout is identity (eval). Returns logits (S, NUM_CLASSES)."""
    Bb, Ss, _ = hidden_states.shape
    x_slab = _pack_x(hidden_states)
    qkvb, projcls = _pack_params(params)

    vmem = pl.BlockSpec(memory_space=pltpu.MemorySpace.VMEM)
    out = pl.pallas_call(
        fused_mha_classifier_kernel,
        out_shape=jax.ShapeDtypeStruct((Ss, NUM_CLASSES), jnp.float32),
        in_specs=[vmem, vmem, vmem],          # 3 whole-array DMAs, no grid/pipeline
        out_specs=vmem,
    )(x_slab, qkvb, projcls)
    return out                                # (S, NUM_CLASSES)


def reference_forward(x, params):
    """Pure-JAX replica of nn.MultiheadAttention(batch_first=False) + mean + classifier."""
    wq, wk, wv, bq, bk, bv, wo, bo, wc, bc = params
    L, N, E = x.shape                                      # (L=B, N=S, E)
    q = x @ wq.T + bq
    k = x @ wk.T + bk
    v = x @ wv.T + bv

    def split(t):                                          # (L,N,E) -> (N,H,L,Dh)
        return jnp.transpose(t.reshape(L, N, NUM_HEADS, HEAD_DIM), (1, 2, 0, 3))

    qh, kh, vh = split(q) * SCALE, split(k), split(v)
    s = jnp.einsum('nhld,nhmd->nhlm', qh, kh)
    p = jax.nn.softmax(s, axis=-1)
    ctx = jnp.einsum('nhlm,nhmd->nhld', p, vh)             # (N,H,L,Dh)
    ctx = jnp.transpose(ctx, (2, 0, 1, 3)).reshape(L, N, E)
    attn = ctx @ wo.T + bo
    pooled = attn.mean(axis=0)                             # (N, E) == mean(dim=0)
    return pooled @ wc.T + bc                              # (N, C)


def make_params(key):
    ks = jax.random.split(key, 8)
    E, C = HIDDEN, NUM_CLASSES
    # nn.MultiheadAttention: in_proj_weight (3E, E) split into Wq/Wk/Wv (E, E),
    # used as x @ W.T; out_proj (E, E); classifier (C, E).
    wq = jax.random.normal(ks[0], (E, E), jnp.float32) * 0.02
    wk = jax.random.normal(ks[1], (E, E), jnp.float32) * 0.02
    wv = jax.random.normal(ks[2], (E, E), jnp.float32) * 0.02
    bq = jax.random.normal(ks[3], (E,), jnp.float32) * 0.02
    bk = jnp.zeros((E,), jnp.float32)
    bv = jax.random.normal(ks[4], (E,), jnp.float32) * 0.02
    wo = jax.random.normal(ks[5], (E, E), jnp.float32) * 0.02
    bo = jnp.zeros((E,), jnp.float32)
    wc = jax.random.normal(ks[6], (C, E), jnp.float32) * 0.02
    bc = jax.random.normal(ks[7], (C,), jnp.float32) * 0.02
    return (wq, wk, wv, bq, bk, bv, wo, bo, wc, bc)


if __name__ == "__main__":
    key = jax.random.PRNGKey(0)
    k_x, k_p = jax.random.split(key)

    # Synthetic concatenated BERT last_hidden_states (B, S, E), natural layout.
    hidden_states = jax.random.normal(k_x, (B, S, HIDDEN), jnp.float32)
    params = make_params(k_p)

    logits = jax.block_until_ready(bert_att_forward(hidden_states, params))
    ref = reference_forward(hidden_states, params)

    assert logits.shape == (S, NUM_CLASSES), logits.shape
    assert jnp.allclose(logits, ref, rtol=1e-3, atol=1e-4), (
        float(jnp.max(jnp.abs(logits - ref))))

    print("KERNEL_OK")
</pallas_src>

<mosaic_0001>
module attributes {stable_mosaic.version = 11 : i64} {
  func.func @fused_mha_classifier_kernel(%arg0: memref<32x160xf32, #tpu.memory_space<vmem>>, %arg1: memref<129x384xf32, #tpu.memory_space<vmem>>, %arg2: memref<129x136xf32, #tpu.memory_space<vmem>>, %arg3: memref<4x8xf32, #tpu.memory_space<vmem>>) attributes {dimension_semantics = [], scalar_prefetch = 0 : i64, scratch_operands = 0 : i64, tpu.core_type = #tpu.core_type<tc>} {
    %c0 = arith.constant 0 : index
    %c0_0 = arith.constant 0 : index
    %0 = vector.load %arg0[%c0, %c0_0] : memref<32x160xf32, #tpu.memory_space<vmem>>, vector<32x128xf32>
    %c0_1 = arith.constant 0 : index
    %c128 = arith.constant 128 : index
    %1 = vector.load %arg0[%c0_1, %c128] : memref<32x160xf32, #tpu.memory_space<vmem>>, vector<32x32xf32>
    %c0_2 = arith.constant 0 : index
    %c0_3 = arith.constant 0 : index
    %2 = vector.load %arg1[%c0_2, %c0_3] : memref<129x384xf32, #tpu.memory_space<vmem>>, vector<128x384xf32>
    %cst = arith.constant dense<0.000000e+00> : vector<32x384xf32>
    %3 = tpu.matmul %0, %2, %cst {dimension_numbers = #tpu.dot_dimension_numbers<[1], [0], [0], [1], [0, 0, 1, 1], [], []>} : vector<32x128xf32>, vector<128x384xf32>, vector<32x384xf32> -> vector<32x384xf32>
    %c128_4 = arith.constant 128 : index
    %c0_5 = arith.constant 0 : index
    %4 = vector.load %arg1[%c128_4, %c0_5] : memref<129x384xf32, #tpu.memory_space<vmem>>, vector<1x384xf32>
    %5 = vector.broadcast %4 : vector<1x384xf32> to vector<32x384xf32>
    %6 = arith.addf %3, %5 : vector<32x384xf32>
    %7 = vector.extract_strided_slice %6 {offsets = [0, 0], sizes = [32, 128], strides = [1, 1]} : vector<32x384xf32> to vector<32x128xf32>
    %cst_6 = arith.constant 0.176776692 : f32
    %8 = vector.broadcast %cst_6 : f32 to vector<32x128xf32>
    %9 = arith.mulf %7, %8 : vector<32x128xf32>
    %10 = vector.extract_strided_slice %6 {offsets = [0, 128], sizes = [32, 128], strides = [1, 1]} : vector<32x384xf32> to vector<32x128xf32>
    %11 = vector.extract_strided_slice %6 {offsets = [0, 256], sizes = [32, 128], strides = [1, 1]} : vector<32x384xf32> to vector<32x128xf32>
    %cst_7 = arith.constant 0.000000e+00 : f32
    %12 = vector.broadcast %cst_7 : f32 to vector<32x128xf32>
    %13 = vector.extract_strided_slice %9 {offsets = [0, 0], sizes = [32, 32], strides = [1, 1]} : vector<32x128xf32> to vector<32x32xf32>
    %14 = vector.extract_strided_slice %10 {offsets = [0, 0], sizes = [32, 32], strides = [1, 1]} : vector<32x128xf32> to vector<32x32xf32>
    %15 = vector.extract_strided_slice %11 {offsets = [0, 0], sizes = [32, 32], strides = [1, 1]} : vector<32x128xf32> to vector<32x32xf32>
    %cst_8 = arith.constant dense<0.000000e+00> : vector<32x32xf32>
    %16 = tpu.matmul %13, %14, %cst_8 {dimension_numbers = #tpu.dot_dimension_numbers<[1], [1], [0], [0], [0, 0, 1, 0], [], []>} : vector<32x32xf32>, vector<32x32xf32>, vector<32x32xf32> -> vector<32x32xf32>
    %17 = arith.addf %16, %1 : vector<32x32xf32>
    %cst_9 = arith.constant dense<0xFF800000> : vector<32xf32>
    %18 = vector.multi_reduction <maximumf>, %17, %cst_9 [1] : vector<32x32xf32> to vector<32xf32>
    %19 = vector.shape_cast %18 : vector<32xf32> to vector<32x1xf32>
    %20 = vector.broadcast %19 : vector<32x1xf32> to vector<32x32xf32>
    %21 = arith.subf %17, %20 : vector<32x32xf32>
    %22 = math.exp %21 : vector<32x32xf32>
    %cst_10 = arith.constant dense<0.000000e+00> : vector<32xf32>
    %23 = vector.multi_reduction <add>, %22, %cst_10 [1] : vector<32x32xf32> to vector<32xf32>
    %24 = vector.shape_cast %23 : vector<32xf32> to vector<32x1xf32>
    %25 = vector.broadcast %24 : vector<32x1xf32> to vector<32x32xf32>
    %26 = arith.divf %22, %25 : vector<32x32xf32>
    %cst_11 = arith.constant dense<0.000000e+00> : vector<32x32xf32>
    %27 = tpu.matmul %26, %15, %cst_11 {dimension_numbers = #tpu.dot_dimension_numbers<[1], [0], [0], [1], [0, 0, 1, 1], [], []>} : vector<32x32xf32>, vector<32x32xf32>, vector<32x32xf32> -> vector<32x32xf32>
    %c0_12 = arith.constant 0 : index
    %c0_13 = arith.constant 0 : index
    %28 = vector.load %arg2[%c0_12, %c0_13] : memref<129x136xf32, #tpu.memory_space<vmem>>, vector<32x128xf32>
    %cst_14 = arith.constant dense<0.000000e+00> : vector<32x128xf32>
    %29 = tpu.matmul %27, %28, %cst_14 {dimension_numbers = #tpu.dot_dimension_numbers<[1], [0], [0], [1], [0, 0, 1, 1], [], []>} : vector<32x32xf32>, vector<32x128xf32>, vector<32x128xf32> -> vector<32x128xf32>
    %30 = arith.addf %12, %29 : vector<32x128xf32>
    %31 = vector.extract_strided_slice %9 {offsets = [0, 32], sizes = [32, 32], strides = [1, 1]} : vector<32x128xf32> to vector<32x32xf32>
    %32 = vector.extract_strided_slice %10 {offsets = [0, 32], sizes = [32, 32], strides = [1, 1]} : vector<32x128xf32> to vector<32x32xf32>
    %33 = vector.extract_strided_slice %11 {offsets = [0, 32], sizes = [32, 32], strides = [1, 1]} : vector<32x128xf32> to vector<32x32xf32>
    %cst_15 = arith.constant dense<0.000000e+00> : vector<32x32xf32>
    %34 = tpu.matmul %31, %32, %cst_15 {dimension_numbers = #tpu.dot_dimension_numbers<[1], [1], [0], [0], [0, 0, 1, 0], [], []>} : vector<32x32xf32>, vector<32x32xf32>, vector<32x32xf32> -> vector<32x32xf32>
    %35 = arith.addf %34, %1 : vector<32x32xf32>
    %cst_16 = arith.constant dense<0xFF800000> : vector<32xf32>
    %36 = vector.multi_reduction <maximumf>, %35, %cst_16 [1] : vector<32x32xf32> to vector<32xf32>
    %37 = vector.shape_cast %36 : vector<32xf32> to vector<32x1xf32>
    %38 = vector.broadcast %37 : vector<32x1xf32> to vector<32x32xf32>
    %39 = arith.subf %35, %38 : vector<32x32xf32>
    %40 = math.exp %39 : vector<32x32xf32>
    %cst_17 = arith.constant dense<0.000000e+00> : vector<32xf32>
    %41 = vector.multi_reduction <add>, %40, %cst_17 [1] : vector<32x32xf32> to vector<32xf32>
    %42 = vector.shape_cast %41 : vector<32xf32> to vector<32x1xf32>
    %43 = vector.broadcast %42 : vector<32x1xf32> to vector<32x32xf32>
    %44 = arith.divf %40, %43 : vector<32x32xf32>
    %cst_18 = arith.constant dense<0.000000e+00> : vector<32x32xf32>
    %45 = tpu.matmul %44, %33, %cst_18 {dimension_numbers = #tpu.dot_dimension_numbers<[1], [0], [0], [1], [0, 0, 1, 1], [], []>} : vector<32x32xf32>, vector<32x32xf32>, vector<32x32xf32> -> vector<32x32xf32>
    %c32 = arith.constant 32 : index
    %c0_19 = arith.constant 0 : index
    %46 = vector.load %arg2[%c32, %c0_19] : memref<129x136xf32, #tpu.memory_space<vmem>>, vector<32x128xf32>
    %cst_20 = arith.constant dense<0.000000e+00> : vector<32x128xf32>
    %47 = tpu.matmul %45, %46, %cst_20 {dimension_numbers = #tpu.dot_dimension_numbers<[1], [0], [0], [1], [0, 0, 1, 1], [], []>} : vector<32x32xf32>, vector<32x128xf32>, vector<32x128xf32> -> vector<32x128xf32>
    %48 = arith.addf %30, %47 : vector<32x128xf32>
    %49 = vector.extract_strided_slice %9 {offsets = [0, 64], sizes = [32, 32], strides = [1, 1]} : vector<32x128xf32> to vector<32x32xf32>
    %50 = vector.extract_strided_slice %10 {offsets = [0, 64], sizes = [32, 32], strides = [1, 1]} : vector<32x128xf32> to vector<32x32xf32>
    %51 = vector.extract_strided_slice %11 {offsets = [0, 64], sizes = [32, 32], strides = [1, 1]} : vector<32x128xf32> to vector<32x32xf32>
    %cst_21 = arith.constant dense<0.000000e+00> : vector<32x32xf32>
    %52 = tpu.matmul %49, %50, %cst_21 {dimension_numbers = #tpu.dot_dimension_numbers<[1], [1], [0], [0], [0, 0, 1, 0], [], []>} : vector<32x32xf32>, vector<32x32xf32>, vector<32x32xf32> -> vector<32x32xf32>
    %53 = arith.addf %52, %1 : vector<32x32xf32>
    %cst_22 = arith.constant dense<0xFF800000> : vector<32xf32>
    %54 = vector.multi_reduction <maximumf>, %53, %cst_22 [1] : vector<32x32xf32> to vector<32xf32>
    %55 = vector.shape_cast %54 : vector<32xf32> to vector<32x1xf32>
    %56 = vector.broadcast %55 : vector<32x1xf32> to vector<32x32xf32>
    %57 = arith.subf %53, %56 : vector<32x32xf32>
    %58 = math.exp %57 : vector<32x32xf32>
    %cst_23 = arith.constant dense<0.000000e+00> : vector<32xf32>
    %59 = vector.multi_reduction <add>, %58, %cst_23 [1] : vector<32x32xf32> to vector<32xf32>
    %60 = vector.shape_cast %59 : vector<32xf32> to vector<32x1xf32>
    %61 = vector.broadcast %60 : vector<32x1xf32> to vector<32x32xf32>
    %62 = arith.divf %58, %61 : vector<32x32xf32>
    %cst_24 = arith.constant dense<0.000000e+00> : vector<32x32xf32>
    %63 = tpu.matmul %62, %51, %cst_24 {dimension_numbers = #tpu.dot_dimension_numbers<[1], [0], [0], [1], [0, 0, 1, 1], [], []>} : vector<32x32xf32>, vector<32x32xf32>, vector<32x32xf32> -> vector<32x32xf32>
    %c64 = arith.constant 64 : index
    %c0_25 = arith.constant 0 : index
    %64 = vector.load %arg2[%c64, %c0_25] : memref<129x136xf32, #tpu.memory_space<vmem>>, vector<32x128xf32>
    %cst_26 = arith.constant dense<0.000000e+00> : vector<32x128xf32>
    %65 = tpu.matmul %63, %64, %cst_26 {dimension_numbers = #tpu.dot_dimension_numbers<[1], [0], [0], [1], [0, 0, 1, 1], [], []>} : vector<32x32xf32>, vector<32x128xf32>, vector<32x128xf32> -> vector<32x128xf32>
    %66 = arith.addf %48, %65 : vector<32x128xf32>
    %67 = vector.extract_strided_slice %9 {offsets = [0, 96], sizes = [32, 32], strides = [1, 1]} : vector<32x128xf32> to vector<32x32xf32>
    %68 = vector.extract_strided_slice %10 {offsets = [0, 96], sizes = [32, 32], strides = [1, 1]} : vector<32x128xf32> to vector<32x32xf32>
    %69 = vector.extract_strided_slice %11 {offsets = [0, 96], sizes = [32, 32], strides = [1, 1]} : vector<32x128xf32> to vector<32x32xf32>
    %cst_27 = arith.constant dense<0.000000e+00> : vector<32x32xf32>
    %70 = tpu.matmul %67, %68, %cst_27 {dimension_numbers = #tpu.dot_dimension_numbers<[1], [1], [0], [0], [0, 0, 1, 0], [], []>} : vector<32x32xf32>, vector<32x32xf32>, vector<32x32xf32> -> vector<32x32xf32>
    %71 = arith.addf %70, %1 : vector<32x32xf32>
    %cst_28 = arith.constant dense<0xFF800000> : vector<32xf32>
    %72 = vector.multi_reduction <maximumf>, %71, %cst_28 [1] : vector<32x32xf32> to vector<32xf32>
    %73 = vector.shape_cast %72 : vector<32xf32> to vector<32x1xf32>
    %74 = vector.broadcast %73 : vector<32x1xf32> to vector<32x32xf32>
    %75 = arith.subf %71, %74 : vector<32x32xf32>
    %76 = math.exp %75 : vector<32x32xf32>
    %cst_29 = arith.constant dense<0.000000e+00> : vector<32xf32>
    %77 = vector.multi_reduction <add>, %76, %cst_29 [1] : vector<32x32xf32> to vector<32xf32>
    %78 = vector.shape_cast %77 : vector<32xf32> to vector<32x1xf32>
    %79 = vector.broadcast %78 : vector<32x1xf32> to vector<32x32xf32>
    %80 = arith.divf %76, %79 : vector<32x32xf32>
    %cst_30 = arith.constant dense<0.000000e+00> : vector<32x32xf32>
    %81 = tpu.matmul %80, %69, %cst_30 {dimension_numbers = #tpu.dot_dimension_numbers<[1], [0], [0], [1], [0, 0, 1, 1], [], []>} : vector<32x32xf32>, vector<32x32xf32>, vector<32x32xf32> -> vector<32x32xf32>
    %c96 = arith.constant 96 : index
    %c0_31 = arith.constant 0 : index
    %82 = vector.load %arg2[%c96, %c0_31] : memref<129x136xf32, #tpu.memory_space<vmem>>, vector<32x128xf32>
    %cst_32 = arith.constant dense<0.000000e+00> : vector<32x128xf32>
    %83 = tpu.matmul %81, %82, %cst_32 {dimension_numbers = #tpu.dot_dimension_numbers<[1], [0], [0], [1], [0, 0, 1, 1], [], []>} : vector<32x32xf32>, vector<32x128xf32>, vector<32x128xf32> -> vector<32x128xf32>
    %84 = arith.addf %66, %83 : vector<32x128xf32>
    %c128_33 = arith.constant 128 : index
    %c0_34 = arith.constant 0 : index
    %85 = vector.load %arg2[%c128_33, %c0_34] : memref<129x136xf32, #tpu.memory_space<vmem>>, vector<1x128xf32>
    %86 = vector.broadcast %85 : vector<1x128xf32> to vector<32x128xf32>
    %87 = arith.addf %84, %86 : vector<32x128xf32>
    %88 = vector.shape_cast %87 : vector<32x128xf32> to vector<4x8x128xf32>
    %cst_35 = arith.constant dense<0.000000e+00> : vector<4x128xf32>
    %89 = vector.multi_reduction <add>, %88, %cst_35 [1] : vector<4x8x128xf32> to vector<4x128xf32>
    %cst_36 = arith.constant 8.000000e+00 : f32
    %90 = vector.broadcast %cst_36 : f32 to vector<4x128xf32>
    %91 = arith.divf %89, %90 : vector<4x128xf32>
    %c0_37 = arith.constant 0 : index
    %c128_38 = arith.constant 128 : index
    %92 = vector.load %arg2[%c0_37, %c128_38] : memref<129x136xf32, #tpu.memory_space<vmem>>, vector<128x8xf32>
    %cst_39 = arith.constant dense<0.000000e+00> : vector<4x8xf32>
    %93 = tpu.matmul %91, %92, %cst_39 {dimension_numbers = #tpu.dot_dimension_numbers<[1], [0], [0], [1], [0, 0, 1, 1], [], []>} : vector<4x128xf32>, vector<128x8xf32>, vector<4x8xf32> -> vector<4x8xf32>
    %c128_40 = arith.constant 128 : index
    %c128_41 = arith.constant 128 : index
    %94 = vector.load %arg2[%c128_40, %c128_41] : memref<129x136xf32, #tpu.memory_space<vmem>>, vector<1x8xf32>
    %95 = vector.broadcast %94 : vector<1x8xf32> to vector<4x8xf32>
    %96 = arith.addf %93, %95 : vector<4x8xf32>
    %c0_42 = arith.constant 0 : index
    %c0_43 = arith.constant 0 : index
    %97 = vector.load %arg3[%c0_42, %c0_43] : memref<4x8xf32, #tpu.memory_space<vmem>>, vector<4x8xf32>
    tpu.vector_store %arg3[%c0_42, %c0_43], %96 {strides = array<i32>} : memref<4x8xf32, #tpu.memory_space<vmem>>, vector<4x8xf32>,
    return
  }
}

</mosaic_0001>

<llo_original>
// kernel: tpu_custom_call.1
$region0: #{tpu_custom_call.1}
  #allocation0 [shape = 'u32[]', space=smem, size = 0x4, offset = 0x4, fixed_abs, tag = 'smem constant byte address 0x4 - core index']
  #allocation1 [shape = 'u32[144,128]{1,0:T(1,128)}', space=vmem, size = 0x12000, scoped, tag = 'internal scratch']
  %s0 = inlined_call_operand.hbm [shape: f32[32,160], index: 0, kind: input, shape index: {}]
  %s1 = inlined_call_operand.hbm [shape: f32[129,384], index: 1, kind: input, shape index: {}]
  %s2 = inlined_call_operand.hbm [shape: f32[129,136], index: 2, kind: input, shape index: {}]
  %s3 = inlined_call_operand.hbm [shape: f32[4,8], index: 3, kind: output, shape index: {}]
  %s4 = sld [smem:[#allocation0]]
  $region34: #{tpu_custom_call.1} parent=0
    _
  %s6 = ssub.s32 1, %s4
  %s7 = scalar_select 0, %s6, %s4
  $region1: #{tpu_custom_call.1} parent=0
    #allocation2 [shape = 'u8[32768]{0}', space=vmem, size = 0x8000, scoped, tag = 'input window, operand 0, single buffered']
    #allocation3 [shape = 's32[1]{0}', space=sflag, size = 0x4, scoped, tag = 'scoped memory for tpu_custom_call.1']
    #allocation4 [shape = 's32[1]{0}', space=sflag, size = 0x4, scoped, tag = 'scoped memory for tpu_custom_call.1']
    #allocation5 [shape = 'u8[208896]{0}', space=vmem, size = 0x33000, scoped, tag = 'input window, operand 1, single buffered']
    #allocation6 [shape = 's32[1]{0}', space=sflag, size = 0x4, scoped, tag = 'scoped memory for tpu_custom_call.1']
    #allocation7 [shape = 'u8[139264]{0}', space=vmem, size = 0x22000, scoped, tag = 'input window, operand 2, single buffered']
    #allocation8 [shape = 'u8[2048]{0}', space=vmem, size = 0x800, scoped, tag = 'output window, operand 0, single buffered']
    %8 = vsyncpa [#allocation3], 0
    %9 = vsyncpa [#allocation6], 0
    %10 = vsyncpa [#allocation4], 0
    // Predicated region
    $region2: #{tpu_custom_call.1} parent=1 // pred_check
      _
    $region3: #{tpu_custom_call.1} parent=1 // pred_check_branch
      %12 = sbr.rel (0) target = $region5
    $region4: #{tpu_custom_call.1} parent=1 // pred_region
      %s14 = ssub.s32 1024, 1024
      %15 = vsyncadd [#allocation3], %s14
      %s16 = sshll.u32 [#allocation2], 4
      %s17 = int_to_ptr.vmem [resolvable:$true] %s16
      %22 = dma.hbm_to_vmem [thread:$0]  %s0, 1024, %s17, [#allocation3], 256, 256, 16
    $region5: #{tpu_custom_call.1} parent=1 // pred_fallthru
      _
    // Predicated region
    $region6: #{tpu_custom_call.1} parent=1 // pred_check
      _
    $region7: #{tpu_custom_call.1} parent=1 // pred_check_branch
      %24 = sbr.rel (0) target = $region9
    $region8: #{tpu_custom_call.1} parent=1 // pred_region
      %s26 = ssub.s32 6528, 6528
      %27 = vsyncadd [#allocation6], %s26
      %s28 = sshll.u32 [#allocation5], 4
      %s29 = int_to_ptr.vmem [resolvable:$true] %s28
      %34 = dma.hbm_to_vmem [thread:$0]  %s1, 6528, %s29, [#allocation6], 384, 384, 24
    $region9: #{tpu_custom_call.1} parent=1 // pred_fallthru
      _
    // Predicated region
    $region10: #{tpu_custom_call.1} parent=1 // pred_check
      _
    $region11: #{tpu_custom_call.1} parent=1 // pred_check_branch
      %36 = sbr.rel (0) target = $region13
    $region12: #{tpu_custom_call.1} parent=1 // pred_region
      %s38 = ssub.s32 4352, 4352
      %39 = vsyncadd [#allocation6], %s38
      %s40 = sshll.u32 [#allocation7], 4
      %s41 = int_to_ptr.vmem [resolvable:$true] %s40
      %46 = dma.hbm_to_vmem [thread:$0]  %s2, 4352, %s41, [#allocation6], 256, 256, 16
    $region13: #{tpu_custom_call.1} parent=1 // pred_fallthru
      _
    // Predicated region
    $region14: #{tpu_custom_call.1} parent=1 // pred_check
      _
    $region15: #{tpu_custom_call.1} parent=1 // pred_check_branch
      %48 = sbr.rel (0) target = $region17
    $region16: #{tpu_custom_call.1} parent=1 // pred_region
      %49 = dma.done [#allocation3], 1024
    $region17: #{tpu_custom_call.1} parent=1 // pred_fallthru
      _
    // Predicated region
    $region18: #{tpu_custom_call.1} parent=1 // pred_check
      _
    $region19: #{tpu_custom_call.1} parent=1 // pred_check_branch
      %51 = sbr.rel (0) target = $region21
    $region20: #{tpu_custom_call.1} parent=1 // pred_region
      %52 = dma.done [#allocation6], 6528
    $region21: #{tpu_custom_call.1} parent=1 // pred_fallthru
      _
    // Predicated region
    $region22: #{tpu_custom_call.1} parent=1 // pred_check
      _
    $region23: #{tpu_custom_call.1} parent=1 // pred_check_branch
      %54 = sbr.rel (0) target = $region25
    $region24: #{tpu_custom_call.1} parent=1 // pred_region
      %55 = dma.done [#allocation6], 4352
    $region25: #{tpu_custom_call.1} parent=1 // pred_fallthru
      _
    %v56 = vld [vmem:[#allocation2] sm:$0xff]
    %v57 = vld [vmem:[#allocation2 + $0x10] sm:$0xff]
    %v58 = vld [vmem:[#allocation2 + $0x20] sm:$0xff]
    %v59 = vld [vmem:[#allocation2 + $0x30] sm:$0xff]
    %v60 = vld [vmem:[#allocation2 + $0x8] sm:$0xff]
    %v61 = vld [vmem:[#allocation2 + $0x18] sm:$0xff]
    %v62 = vld [vmem:[#allocation2 + $0x28] sm:$0xff]
    %v63 = vld [vmem:[#allocation2 + $0x38] sm:$0xff]
    %v64 = vld [vmem:[#allocation5] sm:$0xff]
    %v65 = vld [vmem:[#allocation5 + $0x8] sm:$0xff]
    %v66 = vld [vmem:[#allocation5 + $0x10] sm:$0xff]
    %v67 = vld [vmem:[#allocation5 + $0x18] sm:$0xff]
    %v68 = vld [vmem:[#allocation5 + $0x20] sm:$0xff]
    %v69 = vld [vmem:[#allocation5 + $0x28] sm:$0xff]
    %v70 = vld [vmem:[#allocation5 + $0x30] sm:$0xff]
    %v71 = vld [vmem:[#allocation5 + $0x38] sm:$0xff]
    %v72 = vld [vmem:[#allocation5 + $0x40] sm:$0xff]
    %v73 = vld [vmem:[#allocation5 + $0x48] sm:$0xff]
    %v74 = vld [vmem:[#allocation5 + $0x50] sm:$0xff]
    %v75 = vld [vmem:[#allocation5 + $0x58] sm:$0xff]
    %v76 = vld [vmem:[#allocation5 + $0x60] sm:$0xff]
    %v77 = vld [vmem:[#allocation5 + $0x68] sm:$0xff]
    %v78 = vld [vmem:[#allocation5 + $0x70] sm:$0xff]
    %v79 = vld [vmem:[#allocation5 + $0x78] sm:$0xff]
    %v80 = vld [vmem:[#allocation5 + $0x80] sm:$0xff]
    %v81 = vld [vmem:[#allocation5 + $0x88] sm:$0xff]
    %v82 = vld [vmem:[#allocation5 + $0x90] sm:$0xff]
    %v83 = vld [vmem:[#allocation5 + $0x98] sm:$0xff]
    %v84 = vld [vmem:[#allocation5 + $0xa0] sm:$0xff]
    %v85 = vld [vmem:[#allocation5 + $0xa8] sm:$0xff]
    %v86 = vld [vmem:[#allocation5 + $0xb0] sm:$0xff]
    %v87 = vld [vmem:[#allocation5 + $0xb8] sm:$0xff]
    %v88 = vld [vmem:[#allocation5 + $0xc0] sm:$0xff]
    %v89 = vld [vmem:[#allocation5 + $0xc8] sm:$0xff]
    %v90 = vld [vmem:[#allocation5 + $0xd0] sm:$0xff]
    %v91 = vld [vmem:[#allocation5 + $0xd8] sm:$0xff]
    %v92 = vld [vmem:[#allocation5 + $0xe0] sm:$0xff]
    %v93 = vld [vmem:[#allocation5 + $0xe8] sm:$0xff]
    %v94 = vld [vmem:[#allocation5 + $0xf0] sm:$0xff]
    %v95 = vld [vmem:[#allocation5 + $0xf8] sm:$0xff]
    %v96 = vld [vmem:[#allocation5 + $0x100] sm:$0xff]
    %v97 = vld [vmem:[#allocation5 + $0x108] sm:$0xff]
    %v98 = vld [vmem:[#allocation5 + $0x110] sm:$0xff]
    %v99 = vld [vmem:[#allocation5 + $0x118] sm:$0xff]
    %v100 = vld [vmem:[#allocation5 + $0x120] sm:$0xff]
    %v101 = vld [vmem:[#allocation5 + $0x128] sm:$0xff]
    %v102 = vld [vmem:[#allocation5 + $0x130] sm:$0xff]
    %v103 = vld [vmem:[#allocation5 + $0x138] sm:$0xff]
    %v104 = vld [vmem:[#allocation5 + $0x140] sm:$0xff]
    %v105 = vld [vmem:[#allocation5 + $0x148] sm:$0xff]
    %v106 = vld [vmem:[#allocation5 + $0x150] sm:$0xff]
    %v107 = vld [vmem:[#allocation5 + $0x158] sm:$0xff]
    %v108 = vld [vmem:[#allocation5 + $0x160] sm:$0xff]
    %v109 = vld [vmem:[#allocation5 + $0x168] sm:$0xff]
    %v110 = vld [vmem:[#allocation5 + $0x170] sm:$0xff]
    %v111 = vld [vmem:[#allocation5 + $0x178] sm:$0xff]
    %s112 = scalar_lea.vmem [#allocation5], 384
    %v113 = vld [vmem:[%s112] ss:$8 sm:$0x7]
    %v115 = vlaneseq
    %v116 = vshrl.u32 %v115, 7
    %v117 = vsub.s32 0, %v116
    %v118 = vrot.slane %v113, %v117
    %v119 = vlaneseq
    %v120 = vshrl.u32 %v119, 7
    %v121 = vsub.s32 1, %v120
    %v122 = vrot.slane %v113, %v121
    %v123 = vlaneseq
    %v124 = vshrl.u32 %v123, 7
    %v125 = vsub.s32 2, %v124
    %v126 = vrot.slane %v113, %v125
    %130 = vmatprep.subr.mxu0 %v65
    %131 = vmatpush1.msra.mxu0 %v64
    %132 = vmatprep.subr.mxu0 %v68
    %133 = vmatpush1.msra.mxu0 %v67
    %134 = vmatprep.subr.mxu0 %v71
    %135 = vmatpush1.msra.mxu0 %v70
    %136 = vmatprep.subr.mxu0 %v74
    %137 = vmatpush1.msra.mxu0 %v73
    %138 = vmatprep.subr.mxu0 %v77
    %139 = vmatpush1.msra.mxu0 %v76
    %140 = vmatprep.subr.mxu0 %v80
    %141 = vmatpush1.msra.mxu0 %v79
    %142 = vmatprep.subr.mxu0 %v83
    %143 = vmatpush1.msra.mxu0 %v82
    %144 = vmatprep.subr.mxu0 %v86
    %145 = vmatpush1.msra.mxu0 %v85
    %146 = vmatprep.subr.mxu0 %v89
    %147 = vmatpush1.msra.mxu0 %v88
    %148 = vmatprep.subr.mxu0 %v92
    %149 = vmatpush1.msra.mxu0 %v91
    %150 = vmatprep.subr.mxu0 %v95
    %151 = vmatpush1.msra.mxu0 %v94
    %152 = vmatprep.subr.mxu0 %v98
    %153 = vmatpush1.msra.mxu0 %v97
    %154 = vmatprep.subr.mxu0 %v101
    %155 = vmatpush1.msra.mxu0 %v100
    %156 = vmatprep.subr.mxu0 %v104
    %157 = vmatpush1.msra.mxu0 %v103
    %158 = vmatprep.subr.mxu0 %v107
    %159 = vmatpush1.msra.mxu0 %v106
    %160 = vmatprep.subr.mxu0 %v110
    %161 = vmatpush1.msra.mxu0 %v109
    %162 = vmatprep.subr.mxu0 0.0
    %163 = vmatpush1.msra.mxu0 0.0
    %164 = vmatprep.subr.mxu0 0.0
    %165 = vmatpush1.msra.mxu0 0.0
    %166 = vmatprep.subr.mxu0 0.0
    %167 = vmatpush1.msra.mxu0 0.0
    %168 = vmatprep.subr.mxu0 0.0
    %169 = vmatpush1.msra.mxu0 0.0
    %170 = vmatprep.subr.mxu0 0.0
    %171 = vmatpush1.msra.mxu0 0.0
    %172 = vmatprep.subr.mxu0 0.0
    %173 = vmatpush1.msra.mxu0 0.0
    %174 = vmatprep.subr.mxu0 0.0
    %175 = vmatpush1.msra.mxu0 0.0
    %176 = vmatprep.subr.mxu0 0.0
    %177 = vmatpush1.msra.mxu0 0.0
    %178 = vmatprep.subr.mxu0 0.0
    %179 = vmatpush1.msra.mxu0 0.0
    %180 = vmatprep.subr.mxu0 0.0
    %181 = vmatpush1.msra.mxu0 0.0
    %182 = vmatprep.subr.mxu0 0.0
    %183 = vmatpush1.msra.mxu0 0.0
    %184 = vmatprep.subr.mxu0 0.0
    %185 = vmatpush1.msra.mxu0 0.0
    %186 = vmatprep.subr.mxu0 0.0
    %187 = vmatpush1.msra.mxu0 0.0
    %188 = vmatprep.subr.mxu0 0.0
    %189 = vmatpush1.msra.mxu0 0.0
    %190 = vmatprep.subr.mxu0 0.0
    %191 = vmatpush1.msra.mxu0 0.0
    %192 = vmatprep.subr.mxu0 0.0
    %193 = vmatpush1.msra.mxu0 0.0
    %194 = vmatprep.mubr.f32.mxu0 0.0
    %195 = vmatmul.mubr.f32.gmra.mrb[0].mxu0 %v56
    %v196 = vpop.f32.mrb[0].mxu0
    %v197 = vadd.f32 %v118, %v196
    %v198 = vpop.f32.mrb[0].mxu0
    %v199 = vadd.f32 %v122, %v198
    %200 = vmatprep.mubr.f32.mxu0 0.0
    %201 = vmatmul.mubr.f32.gmra.mrb[0].mxu0 %v57
    %v202 = vpop.f32.mrb[0].mxu0
    %v203 = vadd.f32 %v118, %v202
    %v204 = vpop.f32.mrb[0].mxu0
    %v205 = vadd.f32 %v122, %v204
    %206 = vmatprep.mubr.f32.mxu0 0.0
    %207 = vmatmul.mubr.f32.gmra.mrb[0].mxu0 %v58
    %v208 = vpop.f32.mrb[0].mxu0
    %v209 = vadd.f32 %v118, %v208
    %v210 = vpop.f32.mrb[0].mxu0
    %v211 = vadd.f32 %v122, %v210
    %212 = vmatprep.mubr.f32.mxu0 0.0
    %213 = vmatmul.mubr.f32.gmra.mrb[0].mxu0 %v59
    %v214 = vpop.f32.mrb[0].mxu0
    %v215 = vadd.f32 %v118, %v214
    %v216 = vpop.f32.mrb[0].mxu0
    %v217 = vadd.f32 %v122, %v216
    %218 = vdwg.mxu0
    %219 = vmatprep.subr.mxu0 0.0
    %220 = vmatpush1.msra.mxu0 %v66
    %221 = vmatprep.subr.mxu0 0.0
    %222 = vmatpush1.msra.mxu0 %v69
    %223 = vmatprep.subr.mxu0 0.0
    %224 = vmatpush1.msra.mxu0 %v72
    %225 = vmatprep.subr.mxu0 0.0
    %226 = vmatpush1.msra.mxu0 %v75
    %227 = vmatprep.subr.mxu0 0.0
    %228 = vmatpush1.msra.mxu0 %v78
    %229 = vmatprep.subr.mxu0 0.0
    %230 = vmatpush1.msra.mxu0 %v81
    %231 = vmatprep.subr.mxu0 0.0
    %232 = vmatpush1.msra.mxu0 %v84
    %233 = vmatprep.subr.mxu0 0.0
    %234 = vmatpush1.msra.mxu0 %v87
    %235 = vmatprep.subr.mxu0 0.0
    %236 = vmatpush1.msra.mxu0 %v90
    %237 = vmatprep.subr.mxu0 0.0
    %238 = vmatpush1.msra.mxu0 %v93
    %239 = vmatprep.subr.mxu0 0.0
    %240 = vmatpush1.msra.mxu0 %v96
    %241 = vmatprep.subr.mxu0 0.0
    %242 = vmatpush1.msra.mxu0 %v99
    %243 = vmatprep.subr.mxu0 0.0
    %244 = vmatpush1.msra.mxu0 %v102
    %245 = vmatprep.subr.mxu0 0.0
    %246 = vmatpush1.msra.mxu0 %v105
    %247 = vmatprep.subr.mxu0 0.0
    %248 = vmatpush1.msra.mxu0 %v108
    %249 = vmatprep.subr.mxu0 0.0
    %250 = vmatpush1.msra.mxu0 %v111
    %251 = vmatprep.subr.mxu0 0.0
    %252 = vmatpush1.msra.mxu0 0.0
    %253 = vmatprep.subr.mxu0 0.0
    %254 = vmatpush1.msra.mxu0 0.0
    %255 = vmatprep.subr.mxu0 0.0
    %256 = vmatpush1.msra.mxu0 0.0
    %257 = vmatprep.subr.mxu0 0.0
    %258 = vmatpush1.msra.mxu0 0.0
    %259 = vmatprep.subr.mxu0 0.0
    %260 = vmatpush1.msra.mxu0 0.0
    %261 = vmatprep.subr.mxu0 0.0
    %262 = vmatpush1.msra.mxu0 0.0
    %263 = vmatprep.subr.mxu0 0.0
    %264 = vmatpush1.msra.mxu0 0.0
    %265 = vmatprep.subr.mxu0 0.0
    %266 = vmatpush1.msra.mxu0 0.0
    %267 = vmatprep.subr.mxu0 0.0
    %268 = vmatpush1.msra.mxu0 0.0
    %269 = vmatprep.subr.mxu0 0.0
    %270 = vmatpush1.msra.mxu0 0.0
    %271 = vmatprep.subr.mxu0 0.0
    %272 = vmatpush1.msra.mxu0 0.0
    %273 = vmatprep.subr.mxu0 0.0
    %274 = vmatpush1.msra.mxu0 0.0
    %275 = vmatprep.subr.mxu0 0.0
    %276 = vmatpush1.msra.mxu0 0.0
    %277 = vmatprep.subr.mxu0 0.0
    %278 = vmatpush1.msra.mxu0 0.0
    %279 = vmatprep.subr.mxu0 0.0
    %280 = vmatpush1.msra.mxu0 0.0
    %281 = vmatprep.subr.mxu0 0.0
    %282 = vmatpush1.msra.mxu0 0.0
    %283 = vmatprep.mubr.f32.mxu0 0.0
    %284 = vmatmul.mubr.f32.gmra.mrb[0].mxu0 %v56
    %v285 = vpop.f32.mrb[0].mxu0
    %v286 = vadd.f32 %v126, %v285
    %v287 = vpop.f32.mrb[0].mxu0
    %288 = vmatprep.mubr.f32.mxu0 0.0
    %289 = vmatmul.mubr.f32.gmra.mrb[0].mxu0 %v57
    %v290 = vpop.f32.mrb[0].mxu0
    %v291 = vadd.f32 %v126, %v290
    %v292 = vpop.f32.mrb[0].mxu0
    %293 = vmatprep.mubr.f32.mxu0 0.0
    %294 = vmatmul.mubr.f32.gmra.mrb[0].mxu0 %v58
    %v295 = vpop.f32.mrb[0].mxu0
    %v296 = vadd.f32 %v126, %v295
    %v297 = vpop.f32.mrb[0].mxu0
    %298 = vmatprep.mubr.f32.mxu0 0.0
    %299 = vmatmul.mubr.f32.gmra.mrb[0].mxu0 %v59
    %v300 = vpop.f32.mrb[0].mxu0
    %v301 = vadd.f32 %v126, %v300
    %v302 = vpop.f32.mrb[0].mxu0
    %303 = vdwg.mxu0
    %v304 = vmul.f32 %v197, 0.17677669
    %v305 = vmul.f32 %v203, 0.17677669
    %v306 = vmul.f32 %v209, 0.17677669
    %v307 = vmul.f32 %v215, 0.17677669
    %vm308 = vcmask 261120
    %v310 = vsel %vm308, %v304, 0
    %v313 = vsel %vm308, %v305, 0
    %v316 = vsel %vm308, %v306, 0
    %v319 = vsel %vm308, %v307, 0
    %v322 = vsel %vm308, %v199, 0
    %v325 = vsel %vm308, %v205, 0
    %v328 = vsel %vm308, %v211, 0
    %v331 = vsel %vm308, %v217, 0
    %333 = vmatprep.subr.mxu0 0.0
    %334 = vmatpush1.xpose.msra.mxu0 %v322
    %335 = vmatprep.subr.mxu0 0.0
    %336 = vmatpush1.xpose.msra.mxu0 %v325
    %337 = vmatprep.subr.mxu0 0.0
    %338 = vmatpush1.xpose.msra.mxu0 %v328
    %339 = vmatprep.subr.mxu0 0.0
    %340 = vmatpush1.xpose.msra.mxu0 %v331
    %341 = vmatprep.subr.mxu0 0.0
    %342 = vmatpush1.xpose.msra.mxu0 0.0
    %343 = vmatprep.subr.mxu0 0.0
    %344 = vmatpush1.xpose.msra.mxu0 0.0
    %345 = vmatprep.subr.mxu0 0.0
    %346 = vmatpush1.xpose.msra.mxu0 0.0
    %347 = vmatprep.subr.mxu0 0.0
    %348 = vmatpush1.xpose.msra.mxu0 0.0
    %349 = vmatprep.subr.mxu0 0.0
    %350 = vmatpush1.xpose.msra.mxu0 0.0
    %351 = vmatprep.subr.mxu0 0.0
    %352 = vmatpush1.xpose.msra.mxu0 0.0
    %353 = vmatprep.subr.mxu0 0.0
    %354 = vmatpush1.xpose.msra.mxu0 0.0
    %355 = vmatprep.subr.mxu0 0.0
    %356 = vmatpush1.xpose.msra.mxu0 0.0
    %357 = vmatprep.subr.mxu0 0.0
    %358 = vmatpush1.xpose.msra.mxu0 0.0
    %359 = vmatprep.subr.mxu0 0.0
    %360 = vmatpush1.xpose.msra.mxu0 0.0
    %361 = vmatprep.subr.mxu0 0.0
    %362 = vmatpush1.xpose.msra.mxu0 0.0
    %363 = vmatprep.subr.mxu0 0.0
    %364 = vmatpush1.xpose.msra.mxu0 0.0
    %365 = vmatprep.subr.mxu0 0.0
    %366 = vmatpush1.xpose.msra.mxu0 0.0
    %367 = vmatprep.subr.mxu0 0.0
    %368 = vmatpush1.xpose.msra.mxu0 0.0
    %369 = vmatprep.subr.mxu0 0.0
    %370 = vmatpush1.xpose.msra.mxu0 0.0
    %371 = vmatprep.subr.mxu0 0.0
    %372 = vmatpush1.xpose.msra.mxu0 0.0
    %373 = vmatprep.subr.mxu0 0.0
    %374 = vmatpush1.xpose.msra.mxu0 0.0
    %375 = vmatprep.subr.mxu0 0.0
    %376 = vmatpush1.xpose.msra.mxu0 0.0
    %377 = vmatprep.subr.mxu0 0.0
    %378 = vmatpush1.xpose.msra.mxu0 0.0
    %379 = vmatprep.subr.mxu0 0.0
    %380 = vmatpush1.xpose.msra.mxu0 0.0
    %381 = vmatprep.subr.mxu0 0.0
    %382 = vmatpush1.xpose.msra.mxu0 0.0
    %383 = vmatprep.subr.mxu0 0.0
    %384 = vmatpush1.xpose.msra.mxu0 0.0
    %385 = vmatprep.subr.mxu0 0.0
    %386 = vmatpush1.xpose.msra.mxu0 0.0
    %387 = vmatprep.subr.mxu0 0.0
    %388 = vmatpush1.xpose.msra.mxu0 0.0
    %389 = vmatprep.subr.mxu0 0.0
    %390 = vmatpush1.xpose.msra.mxu0 0.0
    %391 = vmatprep.subr.mxu0 0.0
    %392 = vmatpush1.xpose.msra.mxu0 0.0
    %393 = vmatprep.subr.mxu0 0.0
    %394 = vmatpush1.xpose.msra.mxu0 0.0
    %395 = vmatprep.subr.mxu0 0.0
    %396 = vmatpush1.xpose.msra.mxu0 0.0
    %397 = vmatprep.mubr.f32.mxu0 0.0
    %398 = vmatmul.mubr.f32.gmra.mrb[0].mxu0 %v310
    %v399 = vpop.f32.mrb[0].mxu0
    %v400 = vadd.f32 %v60, %v399
    %v401 = vpop.f32.mrb[0].mxu0
    %402 = vmatprep.mubr.f32.mxu0 0.0
    %403 = vmatmul.mubr.f32.gmra.mrb[0].mxu0 %v313
    %v404 = vpop.f32.mrb[0].mxu0
    %v405 = vadd.f32 %v61, %v404
    %v406 = vpop.f32.mrb[0].mxu0
    %407 = vmatprep.mubr.f32.mxu0 0.0
    %408 = vmatmul.mubr.f32.gmra.mrb[0].mxu0 %v316
    %v409 = vpop.f32.mrb[0].mxu0
    %v410 = vadd.f32 %v62, %v409
    %v411 = vpop.f32.mrb[0].mxu0
    %412 = vmatprep.mubr.f32.mxu0 0.0
    %413 = vmatmul.mubr.f32.gmra.mrb[0].mxu0 %v319
    %v414 = vpop.f32.mrb[0].mxu0
    %v415 = vadd.f32 %v63, %v414
    %v416 = vpop.f32.mrb[0].mxu0
    %417 = vdwg.mxu0
    %v418 = vsel %vm308, %v400, -inf
    %419 = vmax.xlane.f32.xlu0 %v418
    %v420 = vpop.xlane.xlu0 %419
    %v421 = vsel %vm308, %v405, -inf
    %422 = vmax.xlane.f32.xlu0 %v421
    %v423 = vpop.xlane.xlu0 %422
    %v424 = vsel %vm308, %v410, -inf
    %425 = vmax.xlane.f32.xlu0 %v424
    %v426 = vpop.xlane.xlu0 %425
    %v427 = vsel %vm308, %v415, -inf
    %428 = vmax.xlane.f32.xlu0 %v427
    %v429 = vpop.xlane.xlu0 %428
    %v430 = vsub.f32 %v400, %v420
    %v431 = vsub.f32 %v405, %v423
    %v432 = vsub.f32 %v410, %v426
    %v433 = vsub.f32 %v415, %v429
    %v434 = vmul.f32 %v430, 1.442695
    %v435 = vpow.pop %v434
    %v436 = vmul.f32 %v431, 1.442695
    %v437 = vpow.pop %v436
    %v438 = vmul.f32 %v432, 1.442695
    %v439 = vpow.pop %v438
    %v440 = vmul.f32 %v433, 1.442695
    %v441 = vpow.pop %v440
    %v442 = vsel %vm308, %v435, 0.0
    %443 = vadd.xlane.f32.xlu0 %v442
    %v444 = vpop.xlane.xlu0 %443
    %v445 = vsel %vm308, %v437, 0.0
    %446 = vadd.xlane.f32.xlu0 %v445
    %v447 = vpop.xlane.xlu0 %446
    %v448 = vsel %vm308, %v439, 0.0
    %449 = vadd.xlane.f32.xlu0 %v448
    %v450 = vpop.xlane.xlu0 %449
    %v451 = vsel %vm308, %v441, 0.0
    %452 = vadd.xlane.f32.xlu0 %v451
    %v453 = vpop.xlane.xlu0 %452
    %v454 = vrcp.pop %v444
    %v455 = vmul.f32 %v435, %v454
    %v456 = vrcp.pop %v447
    %v457 = vmul.f32 %v437, %v456
    %v458 = vrcp.pop %v450
    %v459 = vmul.f32 %v439, %v458
    %v460 = vrcp.pop %v453
    %v461 = vmul.f32 %v441, %v460
    %v463 = vsel %vm308, %v455, 0
    %v466 = vsel %vm308, %v457, 0
    %v469 = vsel %vm308, %v459, 0
    %v472 = vsel %vm308, %v461, 0
    %474 = vmatprep.subr.mxu0 0.0
    %475 = vmatpush1.msra.mxu0 %v286
    %476 = vmatprep.subr.mxu0 0.0
    %477 = vmatpush1.msra.mxu0 %v291
    %478 = vmatprep.subr.mxu0 0.0
    %479 = vmatpush1.msra.mxu0 %v296
    %480 = vmatprep.subr.mxu0 0.0
    %481 = vmatpush1.msra.mxu0 %v301
    %482 = vmatprep.subr.mxu0 0.0
    %483 = vmatpush1.msra.mxu0 0.0
    %484 = vmatprep.subr.mxu0 0.0
    %485 = vmatpush1.msra.mxu0 0.0
    %486 = vmatprep.subr.mxu0 0.0
    %487 = vmatpush1.msra.mxu0 0.0
    %488 = vmatprep.subr.mxu0 0.0
    %489 = vmatpush1.msra.mxu0 0.0
    %490 = vmatprep.subr.mxu0 0.0
    %491 = vmatpush1.msra.mxu0 0.0
    %492 = vmatprep.subr.mxu0 0.0
    %493 = vmatpush1.msra.mxu0 0.0
    %494 = vmatprep.subr.mxu0 0.0
    %495 = vmatpush1.msra.mxu0 0.0
    %496 = vmatprep.subr.mxu0 0.0
    %497 = vmatpush1.msra.mxu0 0.0
    %498 = vmatprep.subr.mxu0 0.0
    %499 = vmatpush1.msra.mxu0 0.0
    %500 = vmatprep.subr.mxu0 0.0
    %501 = vmatpush1.msra.mxu0 0.0
    %502 = vmatprep.subr.mxu0 0.0
    %503 = vmatpush1.msra.mxu0 0.0
    %504 = vmatprep.subr.mxu0 0.0
    %505 = vmatpush1.msra.mxu0 0.0
    %506 = vmatprep.subr.mxu0 0.0
    %507 = vmatpush1.msra.mxu0 0.0
    %508 = vmatprep.subr.mxu0 0.0
    %509 = vmatpush1.msra.mxu0 0.0
    %510 = vmatprep.subr.mxu0 0.0
    %511 = vmatpush1.msra.mxu0 0.0
    %512 = vmatprep.subr.mxu0 0.0
    %513 = vmatpush1.msra.mxu0 0.0
    %514 = vmatprep.subr.mxu0 0.0
    %515 = vmatpush1.msra.mxu0 0.0
    %516 = vmatprep.subr.mxu0 0.0
    %517 = vmatpush1.msra.mxu0 0.0
    %518 = vmatprep.subr.mxu0 0.0
    %519 = vmatpush1.msra.mxu0 0.0
    %520 = vmatprep.subr.mxu0 0.0
    %521 = vmatpush1.msra.mxu0 0.0
    %522 = vmatprep.subr.mxu0 0.0
    %523 = vmatpush1.msra.mxu0 0.0
    %524 = vmatprep.subr.mxu0 0.0
    %525 = vmatpush1.msra.mxu0 0.0
    %526 = vmatprep.subr.mxu0 0.0
    %527 = vmatpush1.msra.mxu0 0.0
    %528 = vmatprep.subr.mxu0 0.0
    %529 = vmatpush1.msra.mxu0 0.0
    %530 = vmatprep.subr.mxu0 0.0
    %531 = vmatpush1.msra.mxu0 0.0
    %532 = vmatprep.subr.mxu0 0.0
    %533 = vmatpush1.msra.mxu0 0.0
    %534 = vmatprep.subr.mxu0 0.0
    %535 = vmatpush1.msra.mxu0 0.0
    %536 = vmatprep.subr.mxu0 0.0
    %537 = vmatpush1.msra.mxu0 0.0
    %538 = vmatprep.mubr.f32.mxu0 0.0
    %539 = vmatmul.mubr.f32.gmra.mrb[0].mxu0 %v463
    %v540 = vpop.f32.mrb[0].mxu0
    %v541 = vadd.f32 0.0, %v540
    %v542 = vpop.f32.mrb[0].mxu0
    %543 = vmatprep.mubr.f32.mxu0 0.0
    %544 = vmatmul.mubr.f32.gmra.mrb[0].mxu0 %v466
    %v545 = vpop.f32.mrb[0].mxu0
    %v546 = vadd.f32 0.0, %v545
    %v547 = vpop.f32.mrb[0].mxu0
    %548 = vmatprep.mubr.f32.mxu0 0.0
    %549 = vmatmul.mubr.f32.gmra.mrb[0].mxu0 %v469
    %v550 = vpop.f32.mrb[0].mxu0
    %v551 = vadd.f32 0.0, %v550
    %v552 = vpop.f32.mrb[0].mxu0
    %553 = vmatprep.mubr.f32.mxu0 0.0
    %554 = vmatmul.mubr.f32.gmra.mrb[0].mxu0 %v472
    %v555 = vpop.f32.mrb[0].mxu0
    %v556 = vadd.f32 0.0, %v555
    %v557 = vpop.f32.mrb[0].mxu0
    %558 = vdwg.mxu0
    %v559 = vld [vmem:[#allocation7] sm:$0xff]
    %v560 = vld [vmem:[#allocation7 + $0x10] sm:$0xff]
    %v561 = vld [vmem:[#allocation7 + $0x20] sm:$0xff]
    %v562 = vld [vmem:[#allocation7 + $0x30] sm:$0xff]
    %563 = vrot.lane.b32.xlu0 %v304, 96
    %v564 = vpop.permute.xlu0 %563
    %565 = vrot.lane.b32.xlu0 %v305, 96
    %v566 = vpop.permute.xlu0 %565
    %567 = vrot.lane.b32.xlu0 %v306, 96
    %v568 = vpop.permute.xlu0 %567
    %569 = vrot.lane.b32.xlu0 %v307, 96
    %v570 = vpop.permute.xlu0 %569
    %571 = vrot.lane.b32.xlu0 %v199, 96
    %v572 = vpop.permute.xlu0 %571
    %573 = vrot.lane.b32.xlu0 %v205, 96
    %v574 = vpop.permute.xlu0 %573
    %575 = vrot.lane.b32.xlu0 %v211, 96
    %v576 = vpop.permute.xlu0 %575
    %577 = vrot.lane.b32.xlu0 %v217, 96
    %v578 = vpop.permute.xlu0 %577
    %v579 = vsel %vm308, %v564, 0
    %v581 = vsel %vm308, %v566, 0
    %v583 = vsel %vm308, %v568, 0
    %v585 = vsel %vm308, %v570, 0
    %v587 = vsel %vm308, %v572, 0
    %v589 = vsel %vm308, %v574, 0
    %v591 = vsel %vm308, %v576, 0
    %v593 = vsel %vm308, %v578, 0
    %595 = vmatprep.subr.mxu0 0.0
    %596 = vmatpush1.xpose.msra.mxu0 %v587
    %597 = vmatprep.subr.mxu0 0.0
    %598 = vmatpush1.xpose.msra.mxu0 %v589
    %599 = vmatprep.subr.mxu0 0.0
    %600 = vmatpush1.xpose.msra.mxu0 %v591
    %601 = vmatprep.subr.mxu0 0.0
    %602 = vmatpush1.xpose.msra.mxu0 %v593
    %603 = vmatprep.subr.mxu0 0.0
    %604 = vmatpush1.xpose.msra.mxu0 0.0
    %605 = vmatprep.subr.mxu0 0.0
    %606 = vmatpush1.xpose.msra.mxu0 0.0
    %607 = vmatprep.subr.mxu0 0.0
    %608 = vmatpush1.xpose.msra.mxu0 0.0
    %609 = vmatprep.subr.mxu0 0.0
    %610 = vmatpush1.xpose.msra.mxu0 0.0
    %611 = vmatprep.subr.mxu0 0.0
    %612 = vmatpush1.xpose.msra.mxu0 0.0
    %613 = vmatprep.subr.mxu0 0.0
    %614 = vmatpush1.xpose.msra.mxu0 0.0
    %615 = vmatprep.subr.mxu0 0.0
    %616 = vmatpush1.xpose.msra.mxu0 0.0
    %617 = vmatprep.subr.mxu0 0.0
    %618 = vmatpush1.xpose.msra.mxu0 0.0
    %619 = vmatprep.subr.mxu0 0.0
    %620 = vmatpush1.xpose.msra.mxu0 0.0
    %621 = vmatprep.subr.mxu0 0.0
    %622 = vmatpush1.xpose.msra.mxu0 0.0
    %623 = vmatprep.subr.mxu0 0.0
    %624 = vmatpush1.xpose.msra.mxu0 0.0
    %625 = vmatprep.subr.mxu0 0.0
    %626 = vmatpush1.xpose.msra.mxu0 0.0
    %627 = vmatprep.subr.mxu0 0.0
    %628 = vmatpush1.xpose.msra.mxu0 0.0
    %629 = vmatprep.subr.mxu0 0.0
    %630 = vmatpush1.xpose.msra.mxu0 0.0
    %631 = vmatprep.subr.mxu0 0.0
    %632 = vmatpush1.xpose.msra.mxu0 0.0
    %633 = vmatprep.subr.mxu0 0.0
    %634 = vmatpush1.xpose.msra.mxu0 0.0
    %635 = vmatprep.subr.mxu0 0.0
    %636 = vmatpush1.xpose.msra.mxu0 0.0
    %637 = vmatprep.subr.mxu0 0.0
    %638 = vmatpush1.xpose.msra.mxu0 0.0
    %639 = vmatprep.subr.mxu0 0.0
    %640 = vmatpush1.xpose.msra.mxu0 0.0
    %641 = vmatprep.subr.mxu0 0.0
    %642 = vmatpush1.xpose.msra.mxu0 0.0
    %643 = vmatprep.subr.mxu0 0.0
    %644 = vmatpush1.xpose.msra.mxu0 0.0
    %645 = vmatprep.subr.mxu0 0.0
    %646 = vmatpush1.xpose.msra.mxu0 0.0
    %647 = vmatprep.subr.mxu0 0.0
    %648 = vmatpush1.xpose.msra.mxu0 0.0
    %649 = vmatprep.subr.mxu0 0.0
    %650 = vmatpush1.xpose.msra.mxu0 0.0
    %651 = vmatprep.subr.mxu0 0.0
    %652 = vmatpush1.xpose.msra.mxu0 0.0
    %653 = vmatprep.subr.mxu0 0.0
    %654 = vmatpush1.xpose.msra.mxu0 0.0
    %655 = vmatprep.subr.mxu0 0.0
    %656 = vmatpush1.xpose.msra.mxu0 0.0
    %657 = vmatprep.subr.mxu0 0.0
    %658 = vmatpush1.xpose.msra.mxu0 0.0
    %659 = vmatprep.mubr.f32.mxu0 0.0
    %660 = vmatmul.mubr.f32.gmra.mrb[0].mxu0 %v579
    %v661 = vpop.f32.mrb[0].mxu0
    %v662 = vadd.f32 %v60, %v661
    %v663 = vpop.f32.mrb[0].mxu0
    %664 = vmatprep.mubr.f32.mxu0 0.0
    %665 = vmatmul.mubr.f32.gmra.mrb[0].mxu0 %v581
    %v666 = vpop.f32.mrb[0].mxu0
    %v667 = vadd.f32 %v61, %v666
    %v668 = vpop.f32.mrb[0].mxu0
    %669 = vmatprep.mubr.f32.mxu0 0.0
    %670 = vmatmul.mubr.f32.gmra.mrb[0].mxu0 %v583
    %v671 = vpop.f32.mrb[0].mxu0
    %v672 = vadd.f32 %v62, %v671
    %v673 = vpop.f32.mrb[0].mxu0
    %674 = vmatprep.mubr.f32.mxu0 0.0
    %675 = vmatmul.mubr.f32.gmra.mrb[0].mxu0 %v585
    %v676 = vpop.f32.mrb[0].mxu0
    %v677 = vadd.f32 %v63, %v676
    %v678 = vpop.f32.mrb[0].mxu0
    %679 = vdwg.mxu0
    %v680 = vsel %vm308, %v662, -inf
    %681 = vmax.xlane.f32.xlu0 %v680
    %v682 = vpop.xlane.xlu0 %681
    %v683 = vsel %vm308, %v667, -inf
    %684 = vmax.xlane.f32.xlu0 %v683
    %v685 = vpop.xlane.xlu0 %684
    %v686 = vsel %vm308, %v672, -inf
    %687 = vmax.xlane.f32.xlu0 %v686
    %v688 = vpop.xlane.xlu0 %687
    %v689 = vsel %vm308, %v677, -inf
    %690 = vmax.xlane.f32.xlu0 %v689
    %v691 = vpop.xlane.xlu0 %690
    %v692 = vsub.f32 %v662, %v682
    %v693 = vsub.f32 %v667, %v685
    %v694 = vsub.f32 %v672, %v688
    %v695 = vsub.f32 %v677, %v691
    %v696 = vmul.f32 %v692, 1.442695
    %v697 = vpow.pop %v696
    %v698 = vmul.f32 %v693, 1.442695
    %v699 = vpow.pop %v698
    %v700 = vmul.f32 %v694, 1.442695
    %v701 = vpow.pop %v700
    %v702 = vmul.f32 %v695, 1.442695
    %v703 = vpow.pop %v702
    %v704 = vsel %vm308, %v697, 0.0
    %705 = vadd.xlane.f32.xlu0 %v704
    %v706 = vpop.xlane.xlu0 %705
    %v707 = vsel %vm308, %v699, 0.0
    %708 = vadd.xlane.f32.xlu0 %v707
    %v709 = vpop.xlane.xlu0 %708
    %v710 = vsel %vm308, %v701, 0.0
    %711 = vadd.xlane.f32.xlu0 %v710
    %v712 = vpop.xlane.xlu0 %711
    %v713 = vsel %vm308, %v703, 0.0
    %714 = vadd.xlane.f32.xlu0 %v713
    %v715 = vpop.xlane.xlu0 %714
    %v716 = vrcp.pop %v706
    %v717 = vmul.f32 %v697, %v716
    %v718 = vrcp.pop %v709
    %v719 = vmul.f32 %v699, %v718
    %v720 = vrcp.pop %v712
    %v721 = vmul.f32 %v701, %v720
    %v722 = vrcp.pop %v715
    %v723 = vmul.f32 %v703, %v722
    %728 = vrot.lane.b32.xlu0 %v286, 96
    %v729 = vpop.permute.xlu0 %728
    %730 = vrot.lane.b32.xlu0 %v291, 96
    %v731 = vpop.permute.xlu0 %730
    %732 = vrot.lane.b32.xlu0 %v296, 96
    %v733 = vpop.permute.xlu0 %732
    %734 = vrot.lane.b32.xlu0 %v301, 96
    %v735 = vpop.permute.xlu0 %734
    %v741 = vsel %vm308, %v717, 0
    %v744 = vsel %vm308, %v719, 0
    %v747 = vsel %vm308, %v721, 0
    %v750 = vsel %vm308, %v723, 0
    %752 = vmatprep.subr.mxu0 0.0
    %753 = vmatpush1.msra.mxu0 %v729
    %754 = vmatprep.subr.mxu0 0.0
    %755 = vmatpush1.msra.mxu0 %v731
    %756 = vmatprep.subr.mxu0 0.0
    %757 = vmatpush1.msra.mxu0 %v733
    %758 = vmatprep.subr.mxu0 0.0
    %759 = vmatpush1.msra.mxu0 %v735
    %760 = vmatprep.subr.mxu0 0.0
    %761 = vmatpush1.msra.mxu0 0.0
    %762 = vmatprep.subr.mxu0 0.0
    %763 = vmatpush1.msra.mxu0 0.0
    %764 = vmatprep.subr.mxu0 0.0
    %765 = vmatpush1.msra.mxu0 0.0
    %766 = vmatprep.subr.mxu0 0.0
    %767 = vmatpush1.msra.mxu0 0.0
    %768 = vmatprep.subr.mxu0 0.0
    %769 = vmatpush1.msra.mxu0 0.0
    %770 = vmatprep.subr.mxu0 0.0
    %771 = vmatpush1.msra.mxu0 0.0
    %772 = vmatprep.subr.mxu0 0.0
    %773 = vmatpush1.msra.mxu0 0.0
    %774 = vmatprep.subr.mxu0 0.0
    %775 = vmatpush1.msra.mxu0 0.0
    %776 = vmatprep.subr.mxu0 0.0
    %777 = vmatpush1.msra.mxu0 0.0
    %778 = vmatprep.subr.mxu0 0.0
    %779 = vmatpush1.msra.mxu0 0.0
    %780 = vmatprep.subr.mxu0 0.0
    %781 = vmatpush1.msra.mxu0 0.0
    %782 = vmatprep.subr.mxu0 0.0
    %783 = vmatpush1.msra.mxu0 0.0
    %784 = vmatprep.subr.mxu0 0.0
    %785 = vmatpush1.msra.mxu0 0.0
    %786 = vmatprep.subr.mxu0 0.0
    %787 = vmatpush1.msra.mxu0 0.0
    %788 = vmatprep.subr.mxu0 0.0
    %789 = vmatpush1.msra.mxu0 0.0
    %790 = vmatprep.subr.mxu0 0.0
    %791 = vmatpush1.msra.mxu0 0.0
    %792 = vmatprep.subr.mxu0 0.0
    %793 = vmatpush1.msra.mxu0 0.0
    %794 = vmatprep.subr.mxu0 0.0
    %795 = vmatpush1.msra.mxu0 0.0
    %796 = vmatprep.subr.mxu0 0.0
    %797 = vmatpush1.msra.mxu0 0.0
    %798 = vmatprep.subr.mxu0 0.0
    %799 = vmatpush1.msra.mxu0 0.0
    %800 = vmatprep.subr.mxu0 0.0
    %801 = vmatpush1.msra.mxu0 0.0
    %802 = vmatprep.subr.mxu0 0.0
    %803 = vmatpush1.msra.mxu0 0.0
    %804 = vmatprep.subr.mxu0 0.0
    %805 = vmatpush1.msra.mxu0 0.0
    %806 = vmatprep.subr.mxu0 0.0
    %807 = vmatpush1.msra.mxu0 0.0
    %808 = vmatprep.subr.mxu0 0.0
    %809 = vmatpush1.msra.mxu0 0.0
    %810 = vmatprep.subr.mxu0 0.0
    %811 = vmatpush1.msra.mxu0 0.0
    %812 = vmatprep.subr.mxu0 0.0
    %813 = vmatpush1.msra.mxu0 0.0
    %814 = vmatprep.subr.mxu0 0.0
    %815 = vmatpush1.msra.mxu0 0.0
    %816 = vmatprep.mubr.f32.mxu0 0.0
    %817 = vmatmul.mubr.f32.gmra.mrb[0].mxu0 %v741
    %v818 = vpop.f32.mrb[0].mxu0
    %v819 = vadd.f32 0.0, %v818
    %v820 = vpop.f32.mrb[0].mxu0
    %821 = vmatprep.mubr.f32.mxu0 0.0
    %822 = vmatmul.mubr.f32.gmra.mrb[0].mxu0 %v744
    %v823 = vpop.f32.mrb[0].mxu0
    %v824 = vadd.f32 0.0, %v823
    %v825 = vpop.f32.mrb[0].mxu0
    %826 = vmatprep.mubr.f32.mxu0 0.0
    %827 = vmatmul.mubr.f32.gmra.mrb[0].mxu0 %v747
    %v828 = vpop.f32.mrb[0].mxu0
    %v829 = vadd.f32 0.0, %v828
    %v830 = vpop.f32.mrb[0].mxu0
    %831 = vmatprep.mubr.f32.mxu0 0.0
    %832 = vmatmul.mubr.f32.gmra.mrb[0].mxu0 %v750
    %v833 = vpop.f32.mrb[0].mxu0
    %v834 = vadd.f32 0.0, %v833
    %v835 = vpop.f32.mrb[0].mxu0
    %836 = vdwg.mxu0
    %v837 = vld [vmem:[#allocation7 + $0x40] sm:$0xff]
    %v838 = vld [vmem:[#allocation7 + $0x50] sm:$0xff]
    %v839 = vld [vmem:[#allocation7 + $0x60] sm:$0xff]
    %v840 = vld [vmem:[#allocation7 + $0x70] sm:$0xff]
    %v842 = vsel %vm308, %v819, 0
    %v845 = vsel %vm308, %v824, 0
    %v848 = vsel %vm308, %v829, 0
    %v851 = vsel %vm308, %v834, 0
    %853 = vmatprep.subr.mxu0 0.0
    %854 = vmatpush1.msra.mxu0 %v837
    %855 = vmatprep.subr.mxu0 0.0
    %856 = vmatpush1.msra.mxu0 %v838
    %857 = vmatprep.subr.mxu0 0.0
    %858 = vmatpush1.msra.mxu0 %v839
    %859 = vmatprep.subr.mxu0 0.0
    %860 = vmatpush1.msra.mxu0 %v840
    %861 = vmatprep.subr.mxu0 0.0
    %862 = vmatpush1.msra.mxu0 0.0
    %863 = vmatprep.subr.mxu0 0.0
    %864 = vmatpush1.msra.mxu0 0.0
    %865 = vmatprep.subr.mxu0 0.0
    %866 = vmatpush1.msra.mxu0 0.0
    %867 = vmatprep.subr.mxu0 0.0
    %868 = vmatpush1.msra.mxu0 0.0
    %869 = vmatprep.subr.mxu0 0.0
    %870 = vmatpush1.msra.mxu0 0.0
    %871 = vmatprep.subr.mxu0 0.0
    %872 = vmatpush1.msra.mxu0 0.0
    %873 = vmatprep.subr.mxu0 0.0
    %874 = vmatpush1.msra.mxu0 0.0
    %875 = vmatprep.subr.mxu0 0.0
    %876 = vmatpush1.msra.mxu0 0.0
    %877 = vmatprep.subr.mxu0 0.0
    %878 = vmatpush1.msra.mxu0 0.0
    %879 = vmatprep.subr.mxu0 0.0
    %880 = vmatpush1.msra.mxu0 0.0
    %881 = vmatprep.subr.mxu0 0.0
    %882 = vmatpush1.msra.mxu0 0.0
    %883 = vmatprep.subr.mxu0 0.0
    %884 = vmatpush1.msra.mxu0 0.0
    %885 = vmatprep.subr.mxu0 0.0
    %886 = vmatpush1.msra.mxu0 0.0
    %887 = vmatprep.subr.mxu0 0.0
    %888 = vmatpush1.msra.mxu0 0.0
    %889 = vmatprep.subr.mxu0 0.0
    %890 = vmatpush1.msra.mxu0 0.0
    %891 = vmatprep.subr.mxu0 0.0
    %892 = vmatpush1.msra.mxu0 0.0
    %893 = vmatprep.subr.mxu0 0.0
    %894 = vmatpush1.msra.mxu0 0.0
    %895 = vmatprep.subr.mxu0 0.0
    %896 = vmatpush1.msra.mxu0 0.0
    %897 = vmatprep.subr.mxu0 0.0
    %898 = vmatpush1.msra.mxu0 0.0
    %899 = vmatprep.subr.mxu0 0.0
    %900 = vmatpush1.msra.mxu0 0.0
    %901 = vmatprep.subr.mxu0 0.0
    %902 = vmatpush1.msra.mxu0 0.0
    %903 = vmatprep.subr.mxu0 0.0
    %904 = vmatpush1.msra.mxu0 0.0
    %905 = vmatprep.subr.mxu0 0.0
    %906 = vmatpush1.msra.mxu0 0.0
    %907 = vmatprep.subr.mxu0 0.0
    %908 = vmatpush1.msra.mxu0 0.0
    %909 = vmatprep.subr.mxu0 0.0
    %910 = vmatpush1.msra.mxu0 0.0
    %911 = vmatprep.subr.mxu0 0.0
    %912 = vmatpush1.msra.mxu0 0.0
    %913 = vmatprep.subr.mxu0 0.0
    %914 = vmatpush1.msra.mxu0 0.0
    %915 = vmatprep.subr.mxu0 0.0
    %916 = vmatpush1.msra.mxu0 0.0
    %917 = vmatprep.mubr.f32.mxu0 0.0
    %918 = vmatmul.mubr.f32.gmra.mrb[0].mxu0 %v842
    %v919 = vpop.f32.mrb[0].mxu0
    %v920 = vadd.f32 0.0, %v919
    %v921 = vpop.f32.mrb[0].mxu0
    %922 = vmatprep.mubr.f32.mxu0 0.0
    %923 = vmatmul.mubr.f32.gmra.mrb[0].mxu0 %v845
    %v924 = vpop.f32.mrb[0].mxu0
    %v925 = vadd.f32 0.0, %v924
    %v926 = vpop.f32.mrb[0].mxu0
    %927 = vmatprep.mubr.f32.mxu0 0.0
    %928 = vmatmul.mubr.f32.gmra.mrb[0].mxu0 %v848
    %v929 = vpop.f32.mrb[0].mxu0
    %v930 = vadd.f32 0.0, %v929
    %v931 = vpop.f32.mrb[0].mxu0
    %932 = vmatprep.mubr.f32.mxu0 0.0
    %933 = vmatmul.mubr.f32.gmra.mrb[0].mxu0 %v851
    %v934 = vpop.f32.mrb[0].mxu0
    %v935 = vadd.f32 0.0, %v934
    %v936 = vpop.f32.mrb[0].mxu0
    %937 = vdwg.mxu0
    %v939 = vsel %vm308, %v541, 0
    %v942 = vsel %vm308, %v546, 0
    %v945 = vsel %vm308, %v551, 0
    %v948 = vsel %vm308, %v556, 0
    %950 = vmatprep.subr.mxu0 0.0
    %951 = vmatpush1.msra.mxu0 %v559
    %952 = vmatprep.subr.mxu0 0.0
    %953 = vmatpush1.msra.mxu0 %v560
    %954 = vmatprep.subr.mxu0 0.0
    %955 = vmatpush1.msra.mxu0 %v561
    %956 = vmatprep.subr.mxu0 0.0
    %957 = vmatpush1.msra.mxu0 %v562
    %958 = vmatprep.subr.mxu0 0.0
    %959 = vmatpush1.msra.mxu0 0.0
    %960 = vmatprep.subr.mxu0 0.0
    %961 = vmatpush1.msra.mxu0 0.0
    %962 = vmatprep.subr.mxu0 0.0
    %963 = vmatpush1.msra.mxu0 0.0
    %964 = vmatprep.subr.mxu0 0.0
    %965 = vmatpush1.msra.mxu0 0.0
    %966 = vmatprep.subr.mxu0 0.0
    %967 = vmatpush1.msra.mxu0 0.0
    %968 = vmatprep.subr.mxu0 0.0
    %969 = vmatpush1.msra.mxu0 0.0
    %970 = vmatprep.subr.mxu0 0.0
    %971 = vmatpush1.msra.mxu0 0.0
    %972 = vmatprep.subr.mxu0 0.0
    %973 = vmatpush1.msra.mxu0 0.0
    %974 = vmatprep.subr.mxu0 0.0
    %975 = vmatpush1.msra.mxu0 0.0
    %976 = vmatprep.subr.mxu0 0.0
    %977 = vmatpush1.msra.mxu0 0.0
    %978 = vmatprep.subr.mxu0 0.0
    %979 = vmatpush1.msra.mxu0 0.0
    %980 = vmatprep.subr.mxu0 0.0
    %981 = vmatpush1.msra.mxu0 0.0
    %982 = vmatprep.subr.mxu0 0.0
    %983 = vmatpush1.msra.mxu0 0.0
    %984 = vmatprep.subr.mxu0 0.0
    %985 = vmatpush1.msra.mxu0 0.0
    %986 = vmatprep.subr.mxu0 0.0
    %987 = vmatpush1.msra.mxu0 0.0
    %988 = vmatprep.subr.mxu0 0.0
    %989 = vmatpush1.msra.mxu0 0.0
    %990 = vmatprep.subr.mxu0 0.0
    %991 = vmatpush1.msra.mxu0 0.0
    %992 = vmatprep.subr.mxu0 0.0
    %993 = vmatpush1.msra.mxu0 0.0
    %994 = vmatprep.subr.mxu0 0.0
    %995 = vmatpush1.msra.mxu0 0.0
    %996 = vmatprep.subr.mxu0 0.0
    %997 = vmatpush1.msra.mxu0 0.0
    %998 = vmatprep.subr.mxu0 0.0
    %999 = vmatpush1.msra.mxu0 0.0
    %1000 = vmatprep.subr.mxu0 0.0
    %1001 = vmatpush1.msra.mxu0 0.0
    %1002 = vmatprep.subr.mxu0 0.0
    %1003 = vmatpush1.msra.mxu0 0.0
    %1004 = vmatprep.subr.mxu0 0.0
    %1005 = vmatpush1.msra.mxu0 0.0
    %1006 = vmatprep.subr.mxu0 0.0
    %1007 = vmatpush1.msra.mxu0 0.0
    %1008 = vmatprep.subr.mxu0 0.0
    %1009 = vmatpush1.msra.mxu0 0.0
    %1010 = vmatprep.subr.mxu0 0.0
    %1011 = vmatpush1.msra.mxu0 0.0
    %1012 = vmatprep.subr.mxu0 0.0
    %1013 = vmatpush1.msra.mxu0 0.0
    %1014 = vmatprep.mubr.f32.mxu0 0.0
    %1015 = vmatmul.mubr.f32.gmra.mrb[0].mxu0 %v939
    %v1016 = vpop.f32.mrb[0].mxu0
    %v1017 = vadd.f32 %v920, %v1016
    %v1018 = vpop.f32.mrb[0].mxu0
    %1019 = vmatprep.mubr.f32.mxu0 0.0
    %1020 = vmatmul.mubr.f32.gmra.mrb[0].mxu0 %v942
    %v1021 = vpop.f32.mrb[0].mxu0
    %v1022 = vadd.f32 %v925, %v1021
    %v1023 = vpop.f32.mrb[0].mxu0
    %1024 = vmatprep.mubr.f32.mxu0 0.0
    %1025 = vmatmul.mubr.f32.gmra.mrb[0].mxu0 %v945
    %v1026 = vpop.f32.mrb[0].mxu0
    %v1027 = vadd.f32 %v930, %v1026
    %v1028 = vpop.f32.mrb[0].mxu0
    %1029 = vmatprep.mubr.f32.mxu0 0.0
    %1030 = vmatmul.mubr.f32.gmra.mrb[0].mxu0 %v948
    %v1031 = vpop.f32.mrb[0].mxu0
    %v1032 = vadd.f32 %v935, %v1031
    %v1033 = vpop.f32.mrb[0].mxu0
    %1034 = vdwg.mxu0
    %1035 = vrot.lane.b32.xlu0 %v304, 64
    %v1036 = vpop.permute.xlu0 %1035
    %1037 = vrot.lane.b32.xlu0 %v305, 64
    %v1038 = vpop.permute.xlu0 %1037
    %1039 = vrot.lane.b32.xlu0 %v306, 64
    %v1040 = vpop.permute.xlu0 %1039
    %1041 = vrot.lane.b32.xlu0 %v307, 64
    %v1042 = vpop.permute.xlu0 %1041
    %1043 = vrot.lane.b32.xlu0 %v199, 64
    %v1044 = vpop.permute.xlu0 %1043
    %1045 = vrot.lane.b32.xlu0 %v205, 64
    %v1046 = vpop.permute.xlu0 %1045
    %1047 = vrot.lane.b32.xlu0 %v211, 64
    %v1048 = vpop.permute.xlu0 %1047
    %1049 = vrot.lane.b32.xlu0 %v217, 64
    %v1050 = vpop.permute.xlu0 %1049
    %v1051 = vsel %vm308, %v1036, 0
    %v1053 = vsel %vm308, %v1038, 0
    %v1055 = vsel %vm308, %v1040, 0
    %v1057 = vsel %vm308, %v1042, 0
    %v1059 = vsel %vm308, %v1044, 0
    %v1061 = vsel %vm308, %v1046, 0
    %v1063 = vsel %vm308, %v1048, 0
    %v1065 = vsel %vm308, %v1050, 0
    %1067 = vmatprep.subr.mxu0 0.0
    %1068 = vmatpush1.xpose.msra.mxu0 %v1059
    %1069 = vmatprep.subr.mxu0 0.0
    %1070 = vmatpush1.xpose.msra.mxu0 %v1061
    %1071 = vmatprep.subr.mxu0 0.0
    %1072 = vmatpush1.xpose.msra.mxu0 %v1063
    %1073 = vmatprep.subr.mxu0 0.0
    %1074 = vmatpush1.xpose.msra.mxu0 %v1065
    %1075 = vmatprep.subr.mxu0 0.0
    %1076 = vmatpush1.xpose.msra.mxu0 0.0
    %1077 = vmatprep.subr.mxu0 0.0
    %1078 = vmatpush1.xpose.msra.mxu0 0.0
    %1079 = vmatprep.subr.mxu0 0.0
    %1080 = vmatpush1.xpose.msra.mxu0 0.0
    %1081 = vmatprep.subr.mxu0 0.0
    %1082 = vmatpush1.xpose.msra.mxu0 0.0
    %1083 = vmatprep.subr.mxu0 0.0
    %1084 = vmatpush1.xpose.msra.mxu0 0.0
    %1085 = vmatprep.subr.mxu0 0.0
    %1086 = vmatpush1.xpose.msra.mxu0 0.0
    %1087 = vmatprep.subr.mxu0 0.0
    %1088 = vmatpush1.xpose.msra.mxu0 0.0
    %1089 = vmatprep.subr.mxu0 0.0
    %1090 = vmatpush1.xpose.msra.mxu0 0.0
    %1091 = vmatprep.subr.mxu0 0.0
    %1092 = vmatpush1.xpose.msra.mxu0 0.0
    %1093 = vmatprep.subr.mxu0 0.0
    %1094 = vmatpush1.xpose.msra.mxu0 0.0
    %1095 = vmatprep.subr.mxu0 0.0
    %1096 = vmatpush1.xpose.msra.mxu0 0.0
    %1097 = vmatprep.subr.mxu0 0.0
    %1098 = vmatpush1.xpose.msra.mxu0 0.0
    %1099 = vmatprep.subr.mxu0 0.0
    %1100 = vmatpush1.xpose.msra.mxu0 0.0
    %1101 = vmatprep.subr.mxu0 0.0
    %1102 = vmatpush1.xpose.msra.mxu0 0.0
    %1103 = vmatprep.subr.mxu0 0.0
    %1104 = vmatpush1.xpose.msra.mxu0 0.0
    %1105 = vmatprep.subr.mxu0 0.0
    %1106 = vmatpush1.xpose.msra.mxu0 0.0
    %1107 = vmatprep.subr.mxu0 0.0
    %1108 = vmatpush1.xpose.msra.mxu0 0.0
    %1109 = vmatprep.subr.mxu0 0.0
    %1110 = vmatpush1.xpose.msra.mxu0 0.0
    %1111 = vmatprep.subr.mxu0 0.0
    %1112 = vmatpush1.xpose.msra.mxu0 0.0
    %1113 = vmatprep.subr.mxu0 0.0
    %1114 = vmatpush1.xpose.msra.mxu0 0.0
    %1115 = vmatprep.subr.mxu0 0.0
    %1116 = vmatpush1.xpose.msra.mxu0 0.0
    %1117 = vmatprep.subr.mxu0 0.0
    %1118 = vmatpush1.xpose.msra.mxu0 0.0
    %1119 = vmatprep.subr.mxu0 0.0
    %1120 = vmatpush1.xpose.msra.mxu0 0.0
    %1121 = vmatprep.subr.mxu0 0.0
    %1122 = vmatpush1.xpose.msra.mxu0 0.0
    %1123 = vmatprep.subr.mxu0 0.0
    %1124 = vmatpush1.xpose.msra.mxu0 0.0
    %1125 = vmatprep.subr.mxu0 0.0
    %1126 = vmatpush1.xpose.msra.mxu0 0.0
    %1127 = vmatprep.subr.mxu0 0.0
    %1128 = vmatpush1.xpose.msra.mxu0 0.0
    %1129 = vmatprep.subr.mxu0 0.0
    %1130 = vmatpush1.xpose.msra.mxu0 0.0
    %1131 = vmatprep.mubr.f32.mxu0 0.0
    %1132 = vmatmul.mubr.f32.gmra.mrb[0].mxu0 %v1051
    %v1133 = vpop.f32.mrb[0].mxu0
    %v1134 = vadd.f32 %v60, %v1133
    %v1135 = vpop.f32.mrb[0].mxu0
    %1136 = vmatprep.mubr.f32.mxu0 0.0
    %1137 = vmatmul.mubr.f32.gmra.mrb[0].mxu0 %v1053
    %v1138 = vpop.f32.mrb[0].mxu0
    %v1139 = vadd.f32 %v61, %v1138
    %v1140 = vpop.f32.mrb[0].mxu0
    %1141 = vmatprep.mubr.f32.mxu0 0.0
    %1142 = vmatmul.mubr.f32.gmra.mrb[0].mxu0 %v1055
    %v1143 = vpop.f32.mrb[0].mxu0
    %v1144 = vadd.f32 %v62, %v1143
    %v1145 = vpop.f32.mrb[0].mxu0
    %1146 = vmatprep.mubr.f32.mxu0 0.0
    %1147 = vmatmul.mubr.f32.gmra.mrb[0].mxu0 %v1057
    %v1148 = vpop.f32.mrb[0].mxu0
    %v1149 = vadd.f32 %v63, %v1148
    %v1150 = vpop.f32.mrb[0].mxu0
    %1151 = vdwg.mxu0
    %v1152 = vsel %vm308, %v1134, -inf
    %1153 = vmax.xlane.f32.xlu0 %v1152
    %v1154 = vpop.xlane.xlu0 %1153
    %v1155 = vsel %vm308, %v1139, -inf
    %1156 = vmax.xlane.f32.xlu0 %v1155
    %v1157 = vpop.xlane.xlu0 %1156
    %v1158 = vsel %vm308, %v1144, -inf
    %1159 = vmax.xlane.f32.xlu0 %v1158
    %v1160 = vpop.xlane.xlu0 %1159
    %v1161 = vsel %vm308, %v1149, -inf
    %1162 = vmax.xlane.f32.xlu0 %v1161
    %v1163 = vpop.xlane.xlu0 %1162
    %v1164 = vsub.f32 %v1134, %v1154
    %v1165 = vsub.f32 %v1139, %v1157
    %v1166 = vsub.f32 %v1144, %v1160
    %v1167 = vsub.f32 %v1149, %v1163
    %v1168 = vmul.f32 %v1164, 1.442695
    %v1169 = vpow.pop %v1168
    %v1170 = vmul.f32 %v1165, 1.442695
    %v1171 = vpow.pop %v1170
    %v1172 = vmul.f32 %v1166, 1.442695
    %v1173 = vpow.pop %v1172
    %v1174 = vmul.f32 %v1167, 1.442695
    %v1175 = vpow.pop %v1174
    %v1176 = vsel %vm308, %v1169, 0.0
    %1177 = vadd.xlane.f32.xlu0 %v1176
    %v1178 = vpop.xlane.xlu0 %1177
    %v1179 = vsel %vm308, %v1171, 0.0
    %1180 = vadd.xlane.f32.xlu0 %v1179
    %v1181 = vpop.xlane.xlu0 %1180
    %v1182 = vsel %vm308, %v1173, 0.0
    %1183 = vadd.xlane.f32.xlu0 %v1182
    %v1184 = vpop.xlane.xlu0 %1183
    %v1185 = vsel %vm308, %v1175, 0.0
    %1186 = vadd.xlane.f32.xlu0 %v1185
    %v1187 = vpop.xlane.xlu0 %1186
    %v1188 = vrcp.pop %v1178
    %v1189 = vmul.f32 %v1169, %v1188
    %v1190 = vrcp.pop %v1181
    %v1191 = vmul.f32 %v1171, %v1190
    %v1192 = vrcp.pop %v1184
    %v1193 = vmul.f32 %v1173, %v1192
    %v1194 = vrcp.pop %v1187
    %v1195 = vmul.f32 %v1175, %v1194
    %1196 = vrot.lane.b32.xlu0 %v286, 64
    %v1197 = vpop.permute.xlu0 %1196
    %1198 = vrot.lane.b32.xlu0 %v291, 64
    %v1199 = vpop.permute.xlu0 %1198
    %1200 = vrot.lane.b32.xlu0 %v296, 64
    %v1201 = vpop.permute.xlu0 %1200
    %1202 = vrot.lane.b32.xlu0 %v301, 64
    %v1203 = vpop.permute.xlu0 %1202
    %v1209 = vsel %vm308, %v1189, 0
    %v1212 = vsel %vm308, %v1191, 0
    %v1215 = vsel %vm308, %v1193, 0
    %v1218 = vsel %vm308, %v1195, 0
    %1220 = vmatprep.subr.mxu0 0.0
    %1221 = vmatpush1.msra.mxu0 %v1197
    %1222 = vmatprep.subr.mxu0 0.0
    %1223 = vmatpush1.msra.mxu0 %v1199
    %1224 = vmatprep.subr.mxu0 0.0
    %1225 = vmatpush1.msra.mxu0 %v1201
    %1226 = vmatprep.subr.mxu0 0.0
    %1227 = vmatpush1.msra.mxu0 %v1203
    %1228 = vmatprep.subr.mxu0 0.0
    %1229 = vmatpush1.msra.mxu0 0.0
    %1230 = vmatprep.subr.mxu0 0.0
    %1231 = vmatpush1.msra.mxu0 0.0
    %1232 = vmatprep.subr.mxu0 0.0
    %1233 = vmatpush1.msra.mxu0 0.0
    %1234 = vmatprep.subr.mxu0 0.0
    %1235 = vmatpush1.msra.mxu0 0.0
    %1236 = vmatprep.subr.mxu0 0.0
    %1237 = vmatpush1.msra.mxu0 0.0
    %1238 = vmatprep.subr.mxu0 0.0
    %1239 = vmatpush1.msra.mxu0 0.0
    %1240 = vmatprep.subr.mxu0 0.0
    %1241 = vmatpush1.msra.mxu0 0.0
    %1242 = vmatprep.subr.mxu0 0.0
    %1243 = vmatpush1.msra.mxu0 0.0
    %1244 = vmatprep.subr.mxu0 0.0
    %1245 = vmatpush1.msra.mxu0 0.0
    %1246 = vmatprep.subr.mxu0 0.0
    %1247 = vmatpush1.msra.mxu0 0.0
    %1248 = vmatprep.subr.mxu0 0.0
    %1249 = vmatpush1.msra.mxu0 0.0
    %1250 = vmatprep.subr.mxu0 0.0
    %1251 = vmatpush1.msra.mxu0 0.0
    %1252 = vmatprep.subr.mxu0 0.0
    %1253 = vmatpush1.msra.mxu0 0.0
    %1254 = vmatprep.subr.mxu0 0.0
    %1255 = vmatpush1.msra.mxu0 0.0
    %1256 = vmatprep.subr.mxu0 0.0
    %1257 = vmatpush1.msra.mxu0 0.0
    %1258 = vmatprep.subr.mxu0 0.0
    %1259 = vmatpush1.msra.mxu0 0.0
    %1260 = vmatprep.subr.mxu0 0.0
    %1261 = vmatpush1.msra.mxu0 0.0
    %1262 = vmatprep.subr.mxu0 0.0
    %1263 = vmatpush1.msra.mxu0 0.0
    %1264 = vmatprep.subr.mxu0 0.0
    %1265 = vmatpush1.msra.mxu0 0.0
    %1266 = vmatprep.subr.mxu0 0.0
    %1267 = vmatpush1.msra.mxu0 0.0
    %1268 = vmatprep.subr.mxu0 0.0
    %1269 = vmatpush1.msra.mxu0 0.0
    %1270 = vmatprep.subr.mxu0 0.0
    %1271 = vmatpush1.msra.mxu0 0.0
    %1272 = vmatprep.subr.mxu0 0.0
    %1273 = vmatpush1.msra.mxu0 0.0
    %1274 = vmatprep.subr.mxu0 0.0
    %1275 = vmatpush1.msra.mxu0 0.0
    %1276 = vmatprep.subr.mxu0 0.0
    %1277 = vmatpush1.msra.mxu0 0.0
    %1278 = vmatprep.subr.mxu0 0.0
    %1279 = vmatpush1.msra.mxu0 0.0
    %1280 = vmatprep.subr.mxu0 0.0
    %1281 = vmatpush1.msra.mxu0 0.0
    %1282 = vmatprep.subr.mxu0 0.0
    %1283 = vmatpush1.msra.mxu0 0.0
    %1284 = vmatprep.mubr.f32.mxu0 0.0
    %1285 = vmatmul.mubr.f32.gmra.mrb[0].mxu0 %v1209
    %v1286 = vpop.f32.mrb[0].mxu0
    %v1287 = vadd.f32 0.0, %v1286
    %v1288 = vpop.f32.mrb[0].mxu0
    %1289 = vmatprep.mubr.f32.mxu0 0.0
    %1290 = vmatmul.mubr.f32.gmra.mrb[0].mxu0 %v1212
    %v1291 = vpop.f32.mrb[0].mxu0
    %v1292 = vadd.f32 0.0, %v1291
    %v1293 = vpop.f32.mrb[0].mxu0
    %1294 = vmatprep.mubr.f32.mxu0 0.0
    %1295 = vmatmul.mubr.f32.gmra.mrb[0].mxu0 %v1215
    %v1296 = vpop.f32.mrb[0].mxu0
    %v1297 = vadd.f32 0.0, %v1296
    %v1298 = vpop.f32.mrb[0].mxu0
    %1299 = vmatprep.mubr.f32.mxu0 0.0
    %1300 = vmatmul.mubr.f32.gmra.mrb[0].mxu0 %v1218
    %v1301 = vpop.f32.mrb[0].mxu0
    %v1302 = vadd.f32 0.0, %v1301
    %v1303 = vpop.f32.mrb[0].mxu0
    %1304 = vdwg.mxu0
    %v1305 = vld [vmem:[#allocation7 + $0x80] sm:$0xff]
    %v1306 = vld [vmem:[#allocation7 + $0x90] sm:$0xff]
    %v1307 = vld [vmem:[#allocation7 + $0xa0] sm:$0xff]
    %v1308 = vld [vmem:[#allocation7 + $0xb0] sm:$0xff]
    %v1310 = vsel %vm308, %v1287, 0
    %v1313 = vsel %vm308, %v1292, 0
    %v1316 = vsel %vm308, %v1297, 0
    %v1319 = vsel %vm308, %v1302, 0
    %1321 = vmatprep.subr.mxu0 0.0
    %1322 = vmatpush1.msra.mxu0 %v1305
    %1323 = vmatprep.subr.mxu0 0.0
    %1324 = vmatpush1.msra.mxu0 %v1306
    %1325 = vmatprep.subr.mxu0 0.0
    %1326 = vmatpush1.msra.mxu0 %v1307
    %1327 = vmatprep.subr.mxu0 0.0
    %1328 = vmatpush1.msra.mxu0 %v1308
    %1329 = vmatprep.subr.mxu0 0.0
    %1330 = vmatpush1.msra.mxu0 0.0
    %1331 = vmatprep.subr.mxu0 0.0
    %1332 = vmatpush1.msra.mxu0 0.0
    %1333 = vmatprep.subr.mxu0 0.0
    %1334 = vmatpush1.msra.mxu0 0.0
    %1335 = vmatprep.subr.mxu0 0.0
    %1336 = vmatpush1.msra.mxu0 0.0
    %1337 = vmatprep.subr.mxu0 0.0
    %1338 = vmatpush1.msra.mxu0 0.0
    %1339 = vmatprep.subr.mxu0 0.0
    %1340 = vmatpush1.msra.mxu0 0.0
    %1341 = vmatprep.subr.mxu0 0.0
    %1342 = vmatpush1.msra.mxu0 0.0
    %1343 = vmatprep.subr.mxu0 0.0
    %1344 = vmatpush1.msra.mxu0 0.0
    %1345 = vmatprep.subr.mxu0 0.0
    %1346 = vmatpush1.msra.mxu0 0.0
    %1347 = vmatprep.subr.mxu0 0.0
    %1348 = vmatpush1.msra.mxu0 0.0
    %1349 = vmatprep.subr.mxu0 0.0
    %1350 = vmatpush1.msra.mxu0 0.0
    %1351 = vmatprep.subr.mxu0 0.0
    %1352 = vmatpush1.msra.mxu0 0.0
    %1353 = vmatprep.subr.mxu0 0.0
    %1354 = vmatpush1.msra.mxu0 0.0
    %1355 = vmatprep.subr.mxu0 0.0
    %1356 = vmatpush1.msra.mxu0 0.0
    %1357 = vmatprep.subr.mxu0 0.0
    %1358 = vmatpush1.msra.mxu0 0.0
    %1359 = vmatprep.subr.mxu0 0.0
    %1360 = vmatpush1.msra.mxu0 0.0
    %1361 = vmatprep.subr.mxu0 0.0
    %1362 = vmatpush1.msra.mxu0 0.0
    %1363 = vmatprep.subr.mxu0 0.0
    %1364 = vmatpush1.msra.mxu0 0.0
    %1365 = vmatprep.subr.mxu0 0.0
    %1366 = vmatpush1.msra.mxu0 0.0
    %1367 = vmatprep.subr.mxu0 0.0
    %1368 = vmatpush1.msra.mxu0 0.0
    %1369 = vmatprep.subr.mxu0 0.0
    %1370 = vmatpush1.msra.mxu0 0.0
    %1371 = vmatprep.subr.mxu0 0.0
    %1372 = vmatpush1.msra.mxu0 0.0
    %1373 = vmatprep.subr.mxu0 0.0
    %1374 = vmatpush1.msra.mxu0 0.0
    %1375 = vmatprep.subr.mxu0 0.0
    %1376 = vmatpush1.msra.mxu0 0.0
    %1377 = vmatprep.subr.mxu0 0.0
    %1378 = vmatpush1.msra.mxu0 0.0
    %1379 = vmatprep.subr.mxu0 0.0
    %1380 = vmatpush1.msra.mxu0 0.0
    %1381 = vmatprep.subr.mxu0 0.0
    %1382 = vmatpush1.msra.mxu0 0.0
    %1383 = vmatprep.subr.mxu0 0.0
    %1384 = vmatpush1.msra.mxu0 0.0
    %1385 = vmatprep.mubr.f32.mxu0 0.0
    %1386 = vmatmul.mubr.f32.gmra.mrb[0].mxu0 %v1310
    %v1387 = vpop.f32.mrb[0].mxu0
    %v1388 = vadd.f32 0.0, %v1387
    %v1389 = vpop.f32.mrb[0].mxu0
    %1390 = vmatprep.mubr.f32.mxu0 0.0
    %1391 = vmatmul.mubr.f32.gmra.mrb[0].mxu0 %v1313
    %v1392 = vpop.f32.mrb[0].mxu0
    %v1393 = vadd.f32 0.0, %v1392
    %v1394 = vpop.f32.mrb[0].mxu0
    %1395 = vmatprep.mubr.f32.mxu0 0.0
    %1396 = vmatmul.mubr.f32.gmra.mrb[0].mxu0 %v1316
    %v1397 = vpop.f32.mrb[0].mxu0
    %v1398 = vadd.f32 0.0, %v1397
    %v1399 = vpop.f32.mrb[0].mxu0
    %1400 = vmatprep.mubr.f32.mxu0 0.0
    %1401 = vmatmul.mubr.f32.gmra.mrb[0].mxu0 %v1319
    %v1402 = vpop.f32.mrb[0].mxu0
    %v1403 = vadd.f32 0.0, %v1402
    %v1404 = vpop.f32.mrb[0].mxu0
    %1405 = vdwg.mxu0
    %v1406 = vadd.f32 %v1017, %v1388
    %v1407 = vadd.f32 %v1022, %v1393
    %v1408 = vadd.f32 %v1027, %v1398
    %v1409 = vadd.f32 %v1032, %v1403
    %1410 = vrot.lane.b32.xlu0 %v304, 32
    %v1411 = vpop.permute.xlu0 %1410
    %1412 = vrot.lane.b32.xlu0 %v305, 32
    %v1413 = vpop.permute.xlu0 %1412
    %1414 = vrot.lane.b32.xlu0 %v306, 32
    %v1415 = vpop.permute.xlu0 %1414
    %1416 = vrot.lane.b32.xlu0 %v307, 32
    %v1417 = vpop.permute.xlu0 %1416
    %1418 = vrot.lane.b32.xlu0 %v199, 32
    %v1419 = vpop.permute.xlu0 %1418
    %1420 = vrot.lane.b32.xlu0 %v205, 32
    %v1421 = vpop.permute.xlu0 %1420
    %1422 = vrot.lane.b32.xlu0 %v211, 32
    %v1423 = vpop.permute.xlu0 %1422
    %1424 = vrot.lane.b32.xlu0 %v217, 32
    %v1425 = vpop.permute.xlu0 %1424
    %v1426 = vsel %vm308, %v1411, 0
    %v1428 = vsel %vm308, %v1413, 0
    %v1430 = vsel %vm308, %v1415, 0
    %v1432 = vsel %vm308, %v1417, 0
    %v1434 = vsel %vm308, %v1419, 0
    %v1436 = vsel %vm308, %v1421, 0
    %v1438 = vsel %vm308, %v1423, 0
    %v1440 = vsel %vm308, %v1425, 0
    %1442 = vmatprep.subr.mxu0 0.0
    %1443 = vmatpush1.xpose.msra.mxu0 %v1434
    %1444 = vmatprep.subr.mxu0 0.0
    %1445 = vmatpush1.xpose.msra.mxu0 %v1436
    %1446 = vmatprep.subr.mxu0 0.0
    %1447 = vmatpush1.xpose.msra.mxu0 %v1438
    %1448 = vmatprep.subr.mxu0 0.0
    %1449 = vmatpush1.xpose.msra.mxu0 %v1440
    %1450 = vmatprep.subr.mxu0 0.0
    %1451 = vmatpush1.xpose.msra.mxu0 0.0
    %1452 = vmatprep.subr.mxu0 0.0
    %1453 = vmatpush1.xpose.msra.mxu0 0.0
    %1454 = vmatprep.subr.mxu0 0.0
    %1455 = vmatpush1.xpose.msra.mxu0 0.0
    %1456 = vmatprep.subr.mxu0 0.0
    %1457 = vmatpush1.xpose.msra.mxu0 0.0
    %1458 = vmatprep.subr.mxu0 0.0
    %1459 = vmatpush1.xpose.msra.mxu0 0.0
    %1460 = vmatprep.subr.mxu0 0.0
    %1461 = vmatpush1.xpose.msra.mxu0 0.0
    %1462 = vmatprep.subr.mxu0 0.0
    %1463 = vmatpush1.xpose.msra.mxu0 0.0
    %1464 = vmatprep.subr.mxu0 0.0
    %1465 = vmatpush1.xpose.msra.mxu0 0.0
    %1466 = vmatprep.subr.mxu0 0.0
    %1467 = vmatpush1.xpose.msra.mxu0 0.0
    %1468 = vmatprep.subr.mxu0 0.0
    %1469 = vmatpush1.xpose.msra.mxu0 0.0
    %1470 = vmatprep.subr.mxu0 0.0
    %1471 = vmatpush1.xpose.msra.mxu0 0.0
    %1472 = vmatprep.subr.mxu0 0.0
    %1473 = vmatpush1.xpose.msra.mxu0 0.0
    %1474 = vmatprep.subr.mxu0 0.0
    %1475 = vmatpush1.xpose.msra.mxu0 0.0
    %1476 = vmatprep.subr.mxu0 0.0
    %1477 = vmatpush1.xpose.msra.mxu0 0.0
    %1478 = vmatprep.subr.mxu0 0.0
    %1479 = vmatpush1.xpose.msra.mxu0 0.0
    %1480 = vmatprep.subr.mxu0 0.0
    %1481 = vmatpush1.xpose.msra.mxu0 0.0
    %1482 = vmatprep.subr.mxu0 0.0
    %1483 = vmatpush1.xpose.msra.mxu0 0.0
    %1484 = vmatprep.subr.mxu0 0.0
    %1485 = vmatpush1.xpose.msra.mxu0 0.0
    %1486 = vmatprep.subr.mxu0 0.0
    %1487 = vmatpush1.xpose.msra.mxu0 0.0
    %1488 = vmatprep.subr.mxu0 0.0
    %1489 = vmatpush1.xpose.msra.mxu0 0.0
    %1490 = vmatprep.subr.mxu0 0.0
    %1491 = vmatpush1.xpose.msra.mxu0 0.0
    %1492 = vmatprep.subr.mxu0 0.0
    %1493 = vmatpush1.xpose.msra.mxu0 0.0
    %1494 = vmatprep.subr.mxu0 0.0
    %1495 = vmatpush1.xpose.msra.mxu0 0.0
    %1496 = vmatprep.subr.mxu0 0.0
    %1497 = vmatpush1.xpose.msra.mxu0 0.0
    %1498 = vmatprep.subr.mxu0 0.0
    %1499 = vmatpush1.xpose.msra.mxu0 0.0
    %1500 = vmatprep.subr.mxu0 0.0
    %1501 = vmatpush1.xpose.msra.mxu0 0.0
    %1502 = vmatprep.subr.mxu0 0.0
    %1503 = vmatpush1.xpose.msra.mxu0 0.0
    %1504 = vmatprep.subr.mxu0 0.0
    %1505 = vmatpush1.xpose.msra.mxu0 0.0
    %1506 = vmatprep.mubr.f32.mxu0 0.0
    %1507 = vmatmul.mubr.f32.gmra.mrb[0].mxu0 %v1426
    %v1508 = vpop.f32.mrb[0].mxu0
    %v1509 = vadd.f32 %v60, %v1508
    %v1510 = vpop.f32.mrb[0].mxu0
    %1511 = vmatprep.mubr.f32.mxu0 0.0
    %1512 = vmatmul.mubr.f32.gmra.mrb[0].mxu0 %v1428
    %v1513 = vpop.f32.mrb[0].mxu0
    %v1514 = vadd.f32 %v61, %v1513
    %v1515 = vpop.f32.mrb[0].mxu0
    %1516 = vmatprep.mubr.f32.mxu0 0.0
    %1517 = vmatmul.mubr.f32.gmra.mrb[0].mxu0 %v1430
    %v1518 = vpop.f32.mrb[0].mxu0
    %v1519 = vadd.f32 %v62, %v1518
    %v1520 = vpop.f32.mrb[0].mxu0
    %1521 = vmatprep.mubr.f32.mxu0 0.0
    %1522 = vmatmul.mubr.f32.gmra.mrb[0].mxu0 %v1432
    %v1523 = vpop.f32.mrb[0].mxu0
    %v1524 = vadd.f32 %v63, %v1523
    %v1525 = vpop.f32.mrb[0].mxu0
    %1526 = vdwg.mxu0
    %v1527 = vsel %vm308, %v1509, -inf
    %1528 = vmax.xlane.f32.xlu0 %v1527
    %v1529 = vpop.xlane.xlu0 %1528
    %v1530 = vsel %vm308, %v1514, -inf
    %1531 = vmax.xlane.f32.xlu0 %v1530
    %v1532 = vpop.xlane.xlu0 %1531
    %v1533 = vsel %vm308, %v1519, -inf
    %1534 = vmax.xlane.f32.xlu0 %v1533
    %v1535 = vpop.xlane.xlu0 %1534
    %v1536 = vsel %vm308, %v1524, -inf
    %1537 = vmax.xlane.f32.xlu0 %v1536
    %v1538 = vpop.xlane.xlu0 %1537
    %v1539 = vsub.f32 %v1509, %v1529
    %v1540 = vsub.f32 %v1514, %v1532
    %v1541 = vsub.f32 %v1519, %v1535
    %v1542 = vsub.f32 %v1524, %v1538
    %v1543 = vmul.f32 %v1539, 1.442695
    %v1544 = vpow.pop %v1543
    %v1545 = vmul.f32 %v1540, 1.442695
    %v1546 = vpow.pop %v1545
    %v1547 = vmul.f32 %v1541, 1.442695
    %v1548 = vpow.pop %v1547
    %v1549 = vmul.f32 %v1542, 1.442695
    %v1550 = vpow.pop %v1549
    %v1551 = vsel %vm308, %v1544, 0.0
    %1552 = vadd.xlane.f32.xlu0 %v1551
    %v1553 = vpop.xlane.xlu0 %1552
    %v1554 = vsel %vm308, %v1546, 0.0
    %1555 = vadd.xlane.f32.xlu0 %v1554
    %v1556 = vpop.xlane.xlu0 %1555
    %v1557 = vsel %vm308, %v1548, 0.0
    %1558 = vadd.xlane.f32.xlu0 %v1557
    %v1559 = vpop.xlane.xlu0 %1558
    %v1560 = vsel %vm308, %v1550, 0.0
    %1561 = vadd.xlane.f32.xlu0 %v1560
    %v1562 = vpop.xlane.xlu0 %1561
    %v1563 = vrcp.pop %v1553
    %v1564 = vmul.f32 %v1544, %v1563
    %v1565 = vrcp.pop %v1556
    %v1566 = vmul.f32 %v1546, %v1565
    %v1567 = vrcp.pop %v1559
    %v1568 = vmul.f32 %v1548, %v1567
    %v1569 = vrcp.pop %v1562
    %v1570 = vmul.f32 %v1550, %v1569
    %1571 = vrot.lane.b32.xlu0 %v286, 32
    %v1572 = vpop.permute.xlu0 %1571
    %1573 = vrot.lane.b32.xlu0 %v291, 32
    %v1574 = vpop.permute.xlu0 %1573
    %1575 = vrot.lane.b32.xlu0 %v296, 32
    %v1576 = vpop.permute.xlu0 %1575
    %1577 = vrot.lane.b32.xlu0 %v301, 32
    %v1578 = vpop.permute.xlu0 %1577
    %v1584 = vsel %vm308, %v1564, 0
    %v1587 = vsel %vm308, %v1566, 0
    %v1590 = vsel %vm308, %v1568, 0
    %v1593 = vsel %vm308, %v1570, 0
    %1595 = vmatprep.subr.mxu0 0.0
    %1596 = vmatpush1.msra.mxu0 %v1572
    %1597 = vmatprep.subr.mxu0 0.0
    %1598 = vmatpush1.msra.mxu0 %v1574
    %1599 = vmatprep.subr.mxu0 0.0
    %1600 = vmatpush1.msra.mxu0 %v1576
    %1601 = vmatprep.subr.mxu0 0.0
    %1602 = vmatpush1.msra.mxu0 %v1578
    %1603 = vmatprep.subr.mxu0 0.0
    %1604 = vmatpush1.msra.mxu0 0.0
    %1605 = vmatprep.subr.mxu0 0.0
    %1606 = vmatpush1.msra.mxu0 0.0
    %1607 = vmatprep.subr.mxu0 0.0
    %1608 = vmatpush1.msra.mxu0 0.0
    %1609 = vmatprep.subr.mxu0 0.0
    %1610 = vmatpush1.msra.mxu0 0.0
    %1611 = vmatprep.subr.mxu0 0.0
    %1612 = vmatpush1.msra.mxu0 0.0
    %1613 = vmatprep.subr.mxu0 0.0
    %1614 = vmatpush1.msra.mxu0 0.0
    %1615 = vmatprep.subr.mxu0 0.0
    %1616 = vmatpush1.msra.mxu0 0.0
    %1617 = vmatprep.subr.mxu0 0.0
    %1618 = vmatpush1.msra.mxu0 0.0
    %1619 = vmatprep.subr.mxu0 0.0
    %1620 = vmatpush1.msra.mxu0 0.0
    %1621 = vmatprep.subr.mxu0 0.0
    %1622 = vmatpush1.msra.mxu0 0.0
    %1623 = vmatprep.subr.mxu0 0.0
    %1624 = vmatpush1.msra.mxu0 0.0
    %1625 = vmatprep.subr.mxu0 0.0
    %1626 = vmatpush1.msra.mxu0 0.0
    %1627 = vmatprep.subr.mxu0 0.0
    %1628 = vmatpush1.msra.mxu0 0.0
    %1629 = vmatprep.subr.mxu0 0.0
    %1630 = vmatpush1.msra.mxu0 0.0
    %1631 = vmatprep.subr.mxu0 0.0
    %1632 = vmatpush1.msra.mxu0 0.0
    %1633 = vmatprep.subr.mxu0 0.0
    %1634 = vmatpush1.msra.mxu0 0.0
    %1635 = vmatprep.subr.mxu0 0.0
    %1636 = vmatpush1.msra.mxu0 0.0
    %1637 = vmatprep.subr.mxu0 0.0
    %1638 = vmatpush1.msra.mxu0 0.0
    %1639 = vmatprep.subr.mxu0 0.0
    %1640 = vmatpush1.msra.mxu0 0.0
    %1641 = vmatprep.subr.mxu0 0.0
    %1642 = vmatpush1.msra.mxu0 0.0
    %1643 = vmatprep.subr.mxu0 0.0
    %1644 = vmatpush1.msra.mxu0 0.0
    %1645 = vmatprep.subr.mxu0 0.0
    %1646 = vmatpush1.msra.mxu0 0.0
    %1647 = vmatprep.subr.mxu0 0.0
    %1648 = vmatpush1.msra.mxu0 0.0
    %1649 = vmatprep.subr.mxu0 0.0
    %1650 = vmatpush1.msra.mxu0 0.0
    %1651 = vmatprep.subr.mxu0 0.0
    %1652 = vmatpush1.msra.mxu0 0.0
    %1653 = vmatprep.subr.mxu0 0.0
    %1654 = vmatpush1.msra.mxu0 0.0
    %1655 = vmatprep.subr.mxu0 0.0
    %1656 = vmatpush1.msra.mxu0 0.0
    %1657 = vmatprep.subr.mxu0 0.0
    %1658 = vmatpush1.msra.mxu0 0.0
    %1659 = vmatprep.mubr.f32.mxu0 0.0
    %1660 = vmatmul.mubr.f32.gmra.mrb[0].mxu0 %v1584
    %v1661 = vpop.f32.mrb[0].mxu0
    %v1662 = vadd.f32 0.0, %v1661
    %v1663 = vpop.f32.mrb[0].mxu0
    %1664 = vmatprep.mubr.f32.mxu0 0.0
    %1665 = vmatmul.mubr.f32.gmra.mrb[0].mxu0 %v1587
    %v1666 = vpop.f32.mrb[0].mxu0
    %v1667 = vadd.f32 0.0, %v1666
    %v1668 = vpop.f32.mrb[0].mxu0
    %1669 = vmatprep.mubr.f32.mxu0 0.0
    %1670 = vmatmul.mubr.f32.gmra.mrb[0].mxu0 %v1590
    %v1671 = vpop.f32.mrb[0].mxu0
    %v1672 = vadd.f32 0.0, %v1671
    %v1673 = vpop.f32.mrb[0].mxu0
    %1674 = vmatprep.mubr.f32.mxu0 0.0
    %1675 = vmatmul.mubr.f32.gmra.mrb[0].mxu0 %v1593
    %v1676 = vpop.f32.mrb[0].mxu0
    %v1677 = vadd.f32 0.0, %v1676
    %v1678 = vpop.f32.mrb[0].mxu0
    %1679 = vdwg.mxu0
    %v1680 = vld [vmem:[#allocation7 + $0xc0] sm:$0xff]
    %v1681 = vld [vmem:[#allocation7 + $0xd0] sm:$0xff]
    %v1682 = vld [vmem:[#allocation7 + $0xe0] sm:$0xff]
    %v1683 = vld [vmem:[#allocation7 + $0xf0] sm:$0xff]
    %v1685 = vsel %vm308, %v1662, 0
    %v1688 = vsel %vm308, %v1667, 0
    %v1691 = vsel %vm308, %v1672, 0
    %v1694 = vsel %vm308, %v1677, 0
    %1696 = vmatprep.subr.mxu0 0.0
    %1697 = vmatpush1.msra.mxu0 %v1680
    %1698 = vmatprep.subr.mxu0 0.0
    %1699 = vmatpush1.msra.mxu0 %v1681
    %1700 = vmatprep.subr.mxu0 0.0
    %1701 = vmatpush1.msra.mxu0 %v1682
    %1702 = vmatprep.subr.mxu0 0.0
    %1703 = vmatpush1.msra.mxu0 %v1683
    %1704 = vmatprep.subr.mxu0 0.0
    %1705 = vmatpush1.msra.mxu0 0.0
    %1706 = vmatprep.subr.mxu0 0.0
    %1707 = vmatpush1.msra.mxu0 0.0
    %1708 = vmatprep.subr.mxu0 0.0
    %1709 = vmatpush1.msra.mxu0 0.0
    %1710 = vmatprep.subr.mxu0 0.0
    %1711 = vmatpush1.msra.mxu0 0.0
    %1712 = vmatprep.subr.mxu0 0.0
    %1713 = vmatpush1.msra.mxu0 0.0
    %1714 = vmatprep.subr.mxu0 0.0
    %1715 = vmatpush1.msra.mxu0 0.0
    %1716 = vmatprep.subr.mxu0 0.0
    %1717 = vmatpush1.msra.mxu0 0.0
    %1718 = vmatprep.subr.mxu0 0.0
    %1719 = vmatpush1.msra.mxu0 0.0
    %1720 = vmatprep.subr.mxu0 0.0
    %1721 = vmatpush1.msra.mxu0 0.0
    %1722 = vmatprep.subr.mxu0 0.0
    %1723 = vmatpush1.msra.mxu0 0.0
    %1724 = vmatprep.subr.mxu0 0.0
    %1725 = vmatpush1.msra.mxu0 0.0
    %1726 = vmatprep.subr.mxu0 0.0
    %1727 = vmatpush1.msra.mxu0 0.0
    %1728 = vmatprep.subr.mxu0 0.0
    %1729 = vmatpush1.msra.mxu0 0.0
    %1730 = vmatprep.subr.mxu0 0.0
    %1731 = vmatpush1.msra.mxu0 0.0
    %1732 = vmatprep.subr.mxu0 0.0
    %1733 = vmatpush1.msra.mxu0 0.0
    %1734 = vmatprep.subr.mxu0 0.0
    %1735 = vmatpush1.msra.mxu0 0.0
    %1736 = vmatprep.subr.mxu0 0.0
    %1737 = vmatpush1.msra.mxu0 0.0
    %1738 = vmatprep.subr.mxu0 0.0
    %1739 = vmatpush1.msra.mxu0 0.0
    %1740 = vmatprep.subr.mxu0 0.0
    %1741 = vmatpush1.msra.mxu0 0.0
    %1742 = vmatprep.subr.mxu0 0.0
    %1743 = vmatpush1.msra.mxu0 0.0
    %1744 = vmatprep.subr.mxu0 0.0
    %1745 = vmatpush1.msra.mxu0 0.0
    %1746 = vmatprep.subr.mxu0 0.0
    %1747 = vmatpush1.msra.mxu0 0.0
    %1748 = vmatprep.subr.mxu0 0.0
    %1749 = vmatpush1.msra.mxu0 0.0
    %1750 = vmatprep.subr.mxu0 0.0
    %1751 = vmatpush1.msra.mxu0 0.0
    %1752 = vmatprep.subr.mxu0 0.0
    %1753 = vmatpush1.msra.mxu0 0.0
    %1754 = vmatprep.subr.mxu0 0.0
    %1755 = vmatpush1.msra.mxu0 0.0
    %1756 = vmatprep.subr.mxu0 0.0
    %1757 = vmatpush1.msra.mxu0 0.0
    %1758 = vmatprep.subr.mxu0 0.0
    %1759 = vmatpush1.msra.mxu0 0.0
    %1760 = vmatprep.mubr.f32.mxu0 0.0
    %1761 = vmatmul.mubr.f32.gmra.mrb[0].mxu0 %v1685
    %v1762 = vpop.f32.mrb[0].mxu0
    %v1763 = vadd.f32 0.0, %v1762
    %v1764 = vpop.f32.mrb[0].mxu0
    %1765 = vmatprep.mubr.f32.mxu0 0.0
    %1766 = vmatmul.mubr.f32.gmra.mrb[0].mxu0 %v1688
    %v1767 = vpop.f32.mrb[0].mxu0
    %v1768 = vadd.f32 0.0, %v1767
    %v1769 = vpop.f32.mrb[0].mxu0
    %1770 = vmatprep.mubr.f32.mxu0 0.0
    %1771 = vmatmul.mubr.f32.gmra.mrb[0].mxu0 %v1691
    %v1772 = vpop.f32.mrb[0].mxu0
    %v1773 = vadd.f32 0.0, %v1772
    %v1774 = vpop.f32.mrb[0].mxu0
    %1775 = vmatprep.mubr.f32.mxu0 0.0
    %1776 = vmatmul.mubr.f32.gmra.mrb[0].mxu0 %v1694
    %v1777 = vpop.f32.mrb[0].mxu0
    %v1778 = vadd.f32 0.0, %v1777
    %v1779 = vpop.f32.mrb[0].mxu0
    %1780 = vdwg.mxu0
    %v1781 = vadd.f32 %v1406, %v1763
    %v1782 = vadd.f32 %v1407, %v1768
    %v1783 = vadd.f32 %v1408, %v1773
    %v1784 = vadd.f32 %v1409, %v1778
    %v1785 = vld [vmem:[#allocation7 + $0x100] ss:$0 sm:$0xff]
    %v1786 = vadd.f32 %v1781, %v1785
    %v1787 = vadd.f32 %v1782, %v1785
    %v1788 = vadd.f32 %v1783, %v1785
    %v1789 = vadd.f32 %v1784, %v1785
    %v1790 = vrot.slane %v1786, 4
    %v1791 = vadd.f32 %v1786, %v1790
    %v1792 = vrot.slane %v1791, 2
    %v1793 = vadd.f32 %v1791, %v1792
    %v1794 = vrot.slane %v1793, 1
    %v1795 = vadd.f32 %v1793, %v1794
    %v1796 = vrot.slane %v1787, 4
    %v1797 = vadd.f32 %v1787, %v1796
    %v1798 = vrot.slane %v1797, 2
    %v1799 = vadd.f32 %v1797, %v1798
    %v1800 = vrot.slane %v1799, 1
    %v1801 = vadd.f32 %v1799, %v1800
    %v1802 = vrot.slane %v1788, 4
    %v1803 = vadd.f32 %v1788, %v1802
    %v1804 = vrot.slane %v1803, 2
    %v1805 = vadd.f32 %v1803, %v1804
    %v1806 = vrot.slane %v1805, 1
    %v1807 = vadd.f32 %v1805, %v1806
    %v1808 = vrot.slane %v1789, 4
    %v1809 = vadd.f32 %v1789, %v1808
    %v1810 = vrot.slane %v1809, 2
    %v1811 = vadd.f32 %v1809, %v1810
    %v1812 = vrot.slane %v1811, 1
    %v1813 = vadd.f32 %v1811, %v1812
    %v1814 = vrcp.pop 8.0
    %v1815 = vmul.f32 %v1795, %v1814
    %v1816 = vmul.f32 %v1801, %v1814
    %v1817 = vmul.f32 %v1807, %v1814
    %v1818 = vmul.f32 %v1813, %v1814
    %v1819 = vld [vmem:[#allocation7 + $0x8] sm:$0xff]
    %v1820 = vld [vmem:[#allocation7 + $0x18] sm:$0xff]
    %v1821 = vld [vmem:[#allocation7 + $0x28] sm:$0xff]
    %v1822 = vld [vmem:[#allocation7 + $0x38] sm:$0xff]
    %v1823 = vld [vmem:[#allocation7 + $0x48] sm:$0xff]
    %v1824 = vld [vmem:[#allocation7 + $0x58] sm:$0xff]
    %v1825 = vld [vmem:[#allocation7 + $0x68] sm:$0xff]
    %v1826 = vld [vmem:[#allocation7 + $0x78] sm:$0xff]
    %v1827 = vld [vmem:[#allocation7 + $0x88] sm:$0xff]
    %v1828 = vld [vmem:[#allocation7 + $0x98] sm:$0xff]
    %v1829 = vld [vmem:[#allocation7 + $0xa8] sm:$0xff]
    %v1830 = vld [vmem:[#allocation7 + $0xb8] sm:$0xff]
    %v1831 = vld [vmem:[#allocation7 + $0xc8] sm:$0xff]
    %v1832 = vld [vmem:[#allocation7 + $0xd8] sm:$0xff]
    %v1833 = vld [vmem:[#allocation7 + $0xe8] sm:$0xff]
    %v1834 = vld [vmem:[#allocation7 + $0xf8] sm:$0xff]
    %v1835 = vld [vmem:[#allocation7 + $0x108] ss:$0 sm:$0xff]
    %vm1840 = vcmask 1041409
    %v1841 = vsel %vm1840, %v1816, %v1815
    %vm1842 = vcmask 1042434
    %v1843 = vsel %vm1842, %v1817, %v1841
    %vm1844 = vcmask 1043459
    %v1845 = vsel %vm1844, %v1818, %v1843
    %1847 = vmatprep.subr.mxu0 0.0
    %1848 = vmatpush1.msra.mxu0 %v1819
    %1849 = vmatprep.subr.mxu0 0.0
    %1850 = vmatpush1.msra.mxu0 %v1820
    %1851 = vmatprep.subr.mxu0 0.0
    %1852 = vmatpush1.msra.mxu0 %v1821
    %1853 = vmatprep.subr.mxu0 0.0
    %1854 = vmatpush1.msra.mxu0 %v1822
    %1855 = vmatprep.subr.mxu0 0.0
    %1856 = vmatpush1.msra.mxu0 %v1823
    %1857 = vmatprep.subr.mxu0 0.0
    %1858 = vmatpush1.msra.mxu0 %v1824
    %1859 = vmatprep.subr.mxu0 0.0
    %1860 = vmatpush1.msra.mxu0 %v1825
    %1861 = vmatprep.subr.mxu0 0.0
    %1862 = vmatpush1.msra.mxu0 %v1826
    %1863 = vmatprep.subr.mxu0 0.0
    %1864 = vmatpush1.msra.mxu0 %v1827
    %1865 = vmatprep.subr.mxu0 0.0
    %1866 = vmatpush1.msra.mxu0 %v1828
    %1867 = vmatprep.subr.mxu0 0.0
    %1868 = vmatpush1.msra.mxu0 %v1829
    %1869 = vmatprep.subr.mxu0 0.0
    %1870 = vmatpush1.msra.mxu0 %v1830
    %1871 = vmatprep.subr.mxu0 0.0
    %1872 = vmatpush1.msra.mxu0 %v1831
    %1873 = vmatprep.subr.mxu0 0.0
    %1874 = vmatpush1.msra.mxu0 %v1832
    %1875 = vmatprep.subr.mxu0 0.0
    %1876 = vmatpush1.msra.mxu0 %v1833
    %1877 = vmatprep.subr.mxu0 0.0
    %1878 = vmatpush1.msra.mxu0 %v1834
    %1879 = vmatprep.subr.mxu0 0.0
    %1880 = vmatpush1.msra.mxu0 0.0
    %1881 = vmatprep.subr.mxu0 0.0
    %1882 = vmatpush1.msra.mxu0 0.0
    %1883 = vmatprep.subr.mxu0 0.0
    %1884 = vmatpush1.msra.mxu0 0.0
    %1885 = vmatprep.subr.mxu0 0.0
    %1886 = vmatpush1.msra.mxu0 0.0
    %1887 = vmatprep.subr.mxu0 0.0
    %1888 = vmatpush1.msra.mxu0 0.0
    %1889 = vmatprep.subr.mxu0 0.0
    %1890 = vmatpush1.msra.mxu0 0.0
    %1891 = vmatprep.subr.mxu0 0.0
    %1892 = vmatpush1.msra.mxu0 0.0
    %1893 = vmatprep.subr.mxu0 0.0
    %1894 = vmatpush1.msra.mxu0 0.0
    %1895 = vmatprep.subr.mxu0 0.0
    %1896 = vmatpush1.msra.mxu0 0.0
    %1897 = vmatprep.subr.mxu0 0.0
    %1898 = vmatpush1.msra.mxu0 0.0
    %1899 = vmatprep.subr.mxu0 0.0
    %1900 = vmatpush1.msra.mxu0 0.0
    %1901 = vmatprep.subr.mxu0 0.0
    %1902 = vmatpush1.msra.mxu0 0.0
    %1903 = vmatprep.subr.mxu0 0.0
    %1904 = vmatpush1.msra.mxu0 0.0
    %1905 = vmatprep.subr.mxu0 0.0
    %1906 = vmatpush1.msra.mxu0 0.0
    %1907 = vmatprep.subr.mxu0 0.0
    %1908 = vmatpush1.msra.mxu0 0.0
    %1909 = vmatprep.subr.mxu0 0.0
    %1910 = vmatpush1.msra.mxu0 0.0
    %1911 = vmatprep.mubr.f32.mxu0 0.0
    %1912 = vmatmul.mubr.f32.gmra.mrb[0].mxu0 %v1845
    %v1913 = vpop.f32.mrb[0].mxu0
    %v1914 = vadd.f32 %v1835, %v1913
    %v1915 = vpop.f32.mrb[0].mxu0
    %1916 = vdwg.mxu0
    %vm1917 = vcmask 60416
    %1918 = vst.msk [vmem:[#allocation8] sm:$0xf] %vm1917, %v1914
    // Predicated region
    $region26: #{tpu_custom_call.1} parent=1 // pred_check
      _
    $region27: #{tpu_custom_call.1} parent=1 // pred_check_branch
      %1920 = sbr.rel (0) target = $region29
    $region28: #{tpu_custom_call.1} parent=1 // pred_region
      %s1922 = ssub.s32 64, 64
      %1923 = vsyncadd [#allocation4], %s1922
      %s1925 = sshll.u32 [#allocation8], 4
      %s1926 = int_to_ptr.vmem [resolvable:$true] %s1925
      %1928 = dma.vmem_to_hbm [thread:$0]  %s1926, 64, %s3, [#allocation4]
    $region29: #{tpu_custom_call.1} parent=1 // pred_fallthru
      _
    // Predicated region
    $region30: #{tpu_custom_call.1} parent=1 // pred_check
      _
    $region31: #{tpu_custom_call.1} parent=1 // pred_check_branch
      %1930 = sbr.rel (0) target = $region33
    $region32: #{tpu_custom_call.1} parent=1 // pred_region
      %1931 = dma.done [#allocation4], 64
    $region33: #{tpu_custom_call.1} parent=1 // pred_fallthru
      _
    %1932 = vsyncpa [#allocation3], 1
    %1933 = vsyncpa [#allocation6], 1
    %1934 = vsyncpa [#allocation4], 1

</llo_original>
